<compile_context>
chip_gen: v6e
topology: v6e:2x2x1
jax: 0.10.0
libtpu: 0.0.40
codegen_flags: <defaults>
</compile_context>

<pallas_src>
import numpy as np
import jax
import jax.numpy as jnp
from jax.experimental import pallas as pl
from jax.experimental.pallas import tpu as pltpu

# ---- model hyper-parameters (consistent with the module) ----
B = 2
C_IN = 3
H = W = 20                       # must be a multiple of PATCH
PATCH = 5
EMBED = 96
HEADS = 3
HEAD_DIM = EMBED // HEADS        # 32
MLP_HIDDEN = int(EMBED * 4.0)    # 384
NUM_CLASSES = 10
HP, WP = H // PATCH, W // PATCH  # 4, 4
L = HP * WP                      # 16 (seq len after patch embed)
L_MERGE = L // 4                 # 4
MERGE_OUT = 2 * EMBED            # 192
CPP = C_IN * PATCH * PATCH       # 75
EPS = 1e-5                       # nn.LayerNorm default eps
INV_SQRT2 = 0.7071067811865476
LANE = 128                       # lane-dense padded width
BF = jnp.bfloat16
F32 = jnp.float32

# Constant selector for (Patch_Merging row grouping + AdaptiveAvgPool1d(1)):
#   SEL[j*B + b, b*L + 4*m + j] = 0.25   ->  (SEL @ x)[j*B+b] = 0.25*sum_m x[b, 4m+j]
_SEL_NP = np.zeros((4 * B, B * L), np.float32)
for _j in range(4):
    for _b in range(B):
        for _m in range(L_MERGE):
            _SEL_NP[_j * B + _b, _b * L + 4 * _m + _j] = 0.25


# ---------------------------------------------------------------------------
# Fused Pallas kernel
# ---------------------------------------------------------------------------

def _layernorm_pad(x, g, b):
    """LayerNorm over the first EMBED lanes of a 128-lane-padded tensor.

    Padded lanes of x are exactly zero, so plain lane-sums divided by EMBED
    give the correct statistics.  gamma/beta are zero-padded, so the output's
    padded lanes are zero as well.
    """
    mu = jnp.sum(x, axis=-1, keepdims=True) * (1.0 / EMBED)
    ex2 = jnp.sum(x * x, axis=-1, keepdims=True) * (1.0 / EMBED)
    var = ex2 - mu * mu
    return (x - mu) * jax.lax.rsqrt(var + EPS) * g + b


def _fused_swin_kernel(xp_ref, wpat_ref, bpat_ref,
                       g1_ref, be1_ref,
                       wqkv_ref, wpr_ref, bpr_ref,
                       g2_ref, be2_ref,
                       w1_ref, bb1_ref, w2_ref, bb2_ref,
                       sel_ref, wmc_ref, bc_ref,
                       o_ref):
    # ---- patch embedding: (B*L, 128) @ (128, 128) ----
    x = jnp.dot(xp_ref[...].astype(BF), wpat_ref[...],
                preferred_element_type=F32) + bpat_ref[...]        # (B*L, 128) f32

    # ---- attention branch:  x + proj(MHSA(LN1(x))) ----
    xn = _layernorm_pad(x, g1_ref[...], be1_ref[...]).astype(BF)   # (B*L, 128)

    # One fused QKV GEMM; 1/sqrt(head_dim) is pre-folded into the Q weights.
    qkv = jnp.dot(xn, wqkv_ref[...], preferred_element_type=F32)   # (B*L, 384)
    q_all = qkv[:, 0 * LANE:1 * LANE].astype(BF)                   # 128-aligned slices
    k_all = qkv[:, 1 * LANE:2 * LANE].astype(BF)
    v_all = qkv[:, 2 * LANE:3 * LANE].astype(BF)

    heads_out = []
    for h in range(HEADS):                                         # unrolled (3 heads)
        sl = slice(h * HEAD_DIM, (h + 1) * HEAD_DIM)               # 32-lane head slice
        q3 = q_all[:, sl].reshape(B, L, HEAD_DIM)
        k3 = k_all[:, sl].reshape(B, L, HEAD_DIM)
        v3 = v_all[:, sl].reshape(B, L, HEAD_DIM)

        s = jnp.einsum("bqd,bkd->bqk", q3, k3,
                       preferred_element_type=F32)                 # (B, L, L), pre-scaled
        s = s - jnp.max(s, axis=-1, keepdims=True)
        p = jnp.exp(s)
        p = p * pl.reciprocal(jnp.sum(p, axis=-1, keepdims=True), approx=True)

        ho = jnp.einsum("bqk,bkd->bqd", p.astype(BF), v3,
                        preferred_element_type=F32)                # (B, L, hd)
        heads_out.append(ho.reshape(B * L, HEAD_DIM).astype(BF))
    # concat heads (lane placement) + zero pad to 128 lanes -> one proj GEMM
    heads_out.append(jnp.zeros((B * L, LANE - HEADS * HEAD_DIM), BF))
    ho_cat = jnp.concatenate(heads_out, axis=-1)                   # (B*L, 128)
    x = x + jnp.dot(ho_cat, wpr_ref[...],
                    preferred_element_type=F32) + bpr_ref[...]

    # ---- MLP branch:  x + W2(GELU(W1(LN2(x)))) ----
    xn2 = _layernorm_pad(x, g2_ref[...], be2_ref[...]).astype(BF)
    h1 = jnp.dot(xn2, w1_ref[...], preferred_element_type=F32) + bb1_ref[...]
    h1 = jax.nn.gelu(h1, approximate=True)                         # tanh GELU (EUP slot)
    x = x + jnp.dot(h1.astype(BF), w2_ref[...],
                    preferred_element_type=F32) + bb2_ref[...]     # (B*L, 128)

    # ---- Patch_Merging + AdaptiveAvgPool1d(1) + classifier (pre-fused) ----
    # r[j*B+b] = 0.25 * sum_m x[b, 4m+j];  logits = sum_j r_j @ (wm[j] @ wc) + bc
    xb = x.astype(BF)
    r = jnp.dot(sel_ref[...], xb, preferred_element_type=F32)      # (4*B, 128)
    acc = jnp.zeros((B, LANE), F32)
    for j in range(4):                                             # unrolled
        rj = r[j * B:(j + 1) * B, :].astype(BF)                    # (B, 128)
        acc = acc + jnp.dot(rj, wmc_ref[j], preferred_element_type=F32)
    o_ref[...] = acc + bc_ref[...]                                 # (B, 128) lane-dense


# ---------------------------------------------------------------------------
# One-time weight preparation (hoisted out of the per-call jitted path)
# ---------------------------------------------------------------------------

def prepare_params(params):
    """Layout plumbing run ONCE: lane padding, bf16 casts, QKV fusion, scale
    folding, merge(x)classifier fusion, selector constant."""
    # patch embed: Conv2d weight (O,I,kh,kw) -> (CPP, EMBED) -> pad (128, 128)
    w_patch = params["w_conv"].reshape(EMBED, CPP).T                       # (75, 96)
    w_patch_pad = jnp.zeros((LANE, LANE), F32).at[:CPP, :EMBED].set(w_patch).astype(BF)
    b_patch = jnp.zeros((1, LANE), F32).at[:, :EMBED].set(
        params["b_conv"].reshape(1, EMBED))

    (g1, be1, wqkv, wproj, bproj, g2, be2, w1, bb1, w2, bb2) = params["block1"]

    def pad_row(v):
        v = jnp.asarray(v, F32).reshape(1, -1)
        return jnp.zeros((1, LANE), F32).at[:, :v.shape[-1]].set(v)

    g1p, be1p, g2p, be2p = pad_row(g1), pad_row(be1), pad_row(g2), pad_row(be2)

    # fused QKV weight, 1/sqrt(head_dim) folded into Q, output padded to 3*128
    scale = 1.0 / (HEAD_DIM ** 0.5)
    wq = wqkv[:, 0 * EMBED:1 * EMBED] * scale
    wk = wqkv[:, 1 * EMBED:2 * EMBED]
    wv = wqkv[:, 2 * EMBED:3 * EMBED]
    wqkv_pad = jnp.zeros((LANE, 3 * LANE), F32)
    wqkv_pad = wqkv_pad.at[:EMBED, 0 * LANE:0 * LANE + EMBED].set(wq)
    wqkv_pad = wqkv_pad.at[:EMBED, 1 * LANE:1 * LANE + EMBED].set(wk)
    wqkv_pad = wqkv_pad.at[:EMBED, 2 * LANE:2 * LANE + EMBED].set(wv)
    wqkv_pad = wqkv_pad.astype(BF)

    wproj_pad = jnp.zeros((LANE, LANE), F32).at[:EMBED, :EMBED].set(wproj).astype(BF)
    bproj_pad = pad_row(bproj)

    w1_pad = jnp.zeros((LANE, MLP_HIDDEN), F32).at[:EMBED, :].set(w1).astype(BF)
    bb1_f = jnp.asarray(bb1, F32).reshape(1, MLP_HIDDEN)
    w2_pad = jnp.zeros((MLP_HIDDEN, LANE), F32).at[:, :EMBED].set(w2).astype(BF)
    bb2_pad = pad_row(bb2)

    # tail: Patch_Merging weight fused with classifier, selector constant
    sel = jnp.asarray(_SEL_NP, dtype=BF)                                   # (4*B, B*L)
    wc_pad = jnp.zeros((MERGE_OUT, LANE), F32).at[:, :NUM_CLASSES].set(params["w_cls"])
    wm = params["w_merge1"].reshape(4, EMBED, MERGE_OUT)                   # (4, 96, 192)
    wmc = jnp.einsum("jek,kn->jen", wm, wc_pad)                            # (4, 96, 128)
    wmc_pad = jnp.zeros((4, LANE, LANE), F32).at[:, :EMBED, :].set(wmc).astype(BF)
    bc = jnp.zeros((1, LANE), F32).at[:, :NUM_CLASSES].set(params["b_cls"])

    return (w_patch_pad, b_patch, g1p, be1p, wqkv_pad, wproj_pad, bproj_pad,
            g2p, be2p, w1_pad, bb1_f, w2_pad, bb2_pad, sel, wmc_pad, bc)


# ---------------------------------------------------------------------------
# Jitted forward: im2col + ONE gridless pallas_call, nothing else
# ---------------------------------------------------------------------------

_VMEM_SPEC = pl.BlockSpec(memory_space=pltpu.MemorySpace.VMEM)


@jax.jit
def swin_tiny_forward(x, prepped):
    # Conv2d(kernel=stride=PATCH) == non-overlapping patch matmul (im2col),
    # padded to a lane-dense 128-wide slab.
    p = x.reshape(B, C_IN, HP, PATCH, WP, PATCH)
    p = p.transpose(0, 2, 4, 1, 3, 5).reshape(B * L, CPP)                  # (B*L, 75)
    p_pad = jnp.pad(p, ((0, 0), (0, LANE - CPP)))                          # (B*L, 128)

    out_pad = pl.pallas_call(
        _fused_swin_kernel,
        out_shape=jax.ShapeDtypeStruct((B, LANE), jnp.float32),            # lane-dense logits
        in_specs=[_VMEM_SPEC] * (1 + len(prepped)),
        out_specs=_VMEM_SPEC,
    )(p_pad, *prepped)
    return out_pad[:, :NUM_CLASSES]


# ---------------------------------------------------------------------------
# Deterministic parameter init + pure-JAX reference
# ---------------------------------------------------------------------------

def init_params(key):
    ks = jax.random.split(key, 12)

    def w(k, shape, scale=0.02):
        return (scale * jax.random.normal(k, shape)).astype(jnp.float32)

    params = {
        "w_conv": w(ks[0], (EMBED, C_IN, PATCH, PATCH)),     # Conv2d weight (O,I,kh,kw)
        "b_conv": w(ks[1], (EMBED,)),
        "block1": (
            jnp.ones((1, EMBED), jnp.float32),               # ln1 gamma
            jnp.zeros((1, EMBED), jnp.float32),              # ln1 beta
            w(ks[2], (EMBED, 3 * EMBED)),                    # qkv weight (in, out)
            w(ks[3], (EMBED, EMBED)),                        # proj weight (in, out)
            w(ks[4], (1, EMBED)),                            # proj bias
            jnp.ones((1, EMBED), jnp.float32),               # ln2 gamma
            jnp.zeros((1, EMBED), jnp.float32),              # ln2 beta
            w(ks[5], (EMBED, MLP_HIDDEN)),                   # mlp W1
            w(ks[6], (1, MLP_HIDDEN)),                       # mlp b1
            w(ks[7], (MLP_HIDDEN, EMBED)),                   # mlp W2
            w(ks[8], (1, EMBED)),                            # mlp b2
        ),
        "w_merge1": w(ks[9], (4 * EMBED, MERGE_OUT)),        # Patch_Merging (no bias)
        "w_cls": w(ks[10], (MERGE_OUT, NUM_CLASSES)),
        "b_cls": w(ks[11], (1, NUM_CLASSES)),
    }
    return params


def reference_forward(x, params):
    """Pure-JAX f32 mirror of the PyTorch forward (highest matmul precision)."""
    with jax.default_matmul_precision("highest"):
        p = x.reshape(B, C_IN, HP, PATCH, WP, PATCH)
        p = p.transpose(0, 2, 4, 1, 3, 5).reshape(B, L, CPP)
        t = p @ params["w_conv"].reshape(EMBED, -1).T + params["b_conv"]

        (g1, b1, wqkv, wproj, bproj, g2, b2, w1, bb1, w2, bb2) = params["block1"]

        def ln(z, g, b):
            mu = z.mean(-1, keepdims=True)
            var = ((z - mu) ** 2).mean(-1, keepdims=True)
            return (z - mu) / jnp.sqrt(var + EPS) * g + b

        xn = ln(t, g1, b1)
        qkv = (xn @ wqkv).reshape(B, L, 3, HEADS, HEAD_DIM)
        q, k, v = [qkv[:, :, i].transpose(0, 2, 1, 3) for i in range(3)]  # (B,H,L,hd)
        s = (q @ k.transpose(0, 1, 3, 2)) / HEAD_DIM ** 0.5
        a = jax.nn.softmax(s, axis=-1)
        ao = (a @ v).transpose(0, 2, 1, 3).reshape(B, L, EMBED)
        t = t + ao @ wproj + bproj

        xn2 = ln(t, g2, b2)
        hh = xn2 @ w1 + bb1
        hh = 0.5 * hh * (1.0 + jax.lax.erf(hh * INV_SQRT2))               # exact GELU
        t = t + hh @ w2 + bb2

        y = t.reshape(B, L_MERGE, 4 * EMBED) @ params["w_merge1"]
        pooled = y.mean(axis=1)
        return pooled @ params["w_cls"] + params["b_cls"]


# ---------------------------------------------------------------------------

if __name__ == "__main__":
    key = jax.random.PRNGKey(0)
    kx, kp = jax.random.split(key)
    x = jax.random.normal(kx, (B, C_IN, H, W), jnp.float32)
    params = init_params(kp)

    # one-time weight prep (NOT part of the per-call jitted path)
    prepped = prepare_params(params)

    out = jax.block_until_ready(swin_tiny_forward(x, prepped))
    ref = reference_forward(x, params)

    assert out.shape == (B, NUM_CLASSES)
    assert bool(jnp.all(jnp.isfinite(out)))
    # kernel uses bf16 MXU operands (f32 accum), approx softmax reciprocal and
    # tanh-GELU; reference is f32/highest with exact erf GELU.
    assert bool(jnp.allclose(out, ref, atol=1e-2, rtol=1e-2)), (
        f"max abs err {float(jnp.max(jnp.abs(out - ref)))}")
    print("KERNEL_OK")
</pallas_src>

<mosaic_0001>
module attributes {stable_mosaic.version = 11 : i64} {
  func.func @_fused_swin_kernel(%arg0: memref<32x128xf32, #tpu.memory_space<vmem>>, %arg1: memref<128x128xbf16, #tpu.memory_space<vmem>>, %arg2: memref<1x128xf32, #tpu.memory_space<vmem>>, %arg3: memref<1x128xf32, #tpu.memory_space<vmem>>, %arg4: memref<1x128xf32, #tpu.memory_space<vmem>>, %arg5: memref<128x384xbf16, #tpu.memory_space<vmem>>, %arg6: memref<128x128xbf16, #tpu.memory_space<vmem>>, %arg7: memref<1x128xf32, #tpu.memory_space<vmem>>, %arg8: memref<1x128xf32, #tpu.memory_space<vmem>>, %arg9: memref<1x128xf32, #tpu.memory_space<vmem>>, %arg10: memref<128x384xbf16, #tpu.memory_space<vmem>>, %arg11: memref<1x384xf32, #tpu.memory_space<vmem>>, %arg12: memref<384x128xbf16, #tpu.memory_space<vmem>>, %arg13: memref<1x128xf32, #tpu.memory_space<vmem>>, %arg14: memref<8x32xbf16, #tpu.memory_space<vmem>>, %arg15: memref<4x128x128xbf16, #tpu.memory_space<vmem>>, %arg16: memref<1x128xf32, #tpu.memory_space<vmem>>, %arg17: memref<2x128xf32, #tpu.memory_space<vmem>>) attributes {dimension_semantics = [], scalar_prefetch = 0 : i64, scratch_operands = 0 : i64, tpu.core_type = #tpu.core_type<tc>} {
    %c0 = arith.constant 0 : index
    %c0_0 = arith.constant 0 : index
    %0 = vector.load %arg0[%c0, %c0_0] : memref<32x128xf32, #tpu.memory_space<vmem>>, vector<32x128xf32>
    %1 = arith.truncf %0 : vector<32x128xf32> to vector<32x128xbf16>
    %c0_1 = arith.constant 0 : index
    %c0_2 = arith.constant 0 : index
    %2 = vector.load %arg1[%c0_1, %c0_2] : memref<128x128xbf16, #tpu.memory_space<vmem>>, vector<128x128xbf16>
    %cst = arith.constant dense<0.000000e+00> : vector<32x128xf32>
    %3 = tpu.matmul %1, %2, %cst {dimension_numbers = #tpu.dot_dimension_numbers<[1], [0], [0], [1], [0, 0, 1, 1], [], []>} : vector<32x128xbf16>, vector<128x128xbf16>, vector<32x128xf32> -> vector<32x128xf32>
    %c0_3 = arith.constant 0 : index
    %c0_4 = arith.constant 0 : index
    %4 = vector.load %arg2[%c0_3, %c0_4] : memref<1x128xf32, #tpu.memory_space<vmem>>, vector<1x128xf32>
    %5 = vector.broadcast %4 : vector<1x128xf32> to vector<32x128xf32>
    %6 = arith.addf %3, %5 : vector<32x128xf32>
    %c0_5 = arith.constant 0 : index
    %c0_6 = arith.constant 0 : index
    %7 = vector.load %arg3[%c0_5, %c0_6] : memref<1x128xf32, #tpu.memory_space<vmem>>, vector<1x128xf32>
    %c0_7 = arith.constant 0 : index
    %c0_8 = arith.constant 0 : index
    %8 = vector.load %arg4[%c0_7, %c0_8] : memref<1x128xf32, #tpu.memory_space<vmem>>, vector<1x128xf32>
    %cst_9 = arith.constant dense<0.000000e+00> : vector<32xf32>
    %9 = vector.multi_reduction <add>, %6, %cst_9 [1] : vector<32x128xf32> to vector<32xf32>
    %10 = vector.shape_cast %9 : vector<32xf32> to vector<32x1xf32>
    %cst_10 = arith.constant 0.010416667 : f32
    %11 = vector.broadcast %cst_10 : f32 to vector<32x1xf32>
    %12 = arith.mulf %10, %11 : vector<32x1xf32>
    %13 = arith.mulf %6, %6 : vector<32x128xf32>
    %cst_11 = arith.constant dense<0.000000e+00> : vector<32xf32>
    %14 = vector.multi_reduction <add>, %13, %cst_11 [1] : vector<32x128xf32> to vector<32xf32>
    %15 = vector.shape_cast %14 : vector<32xf32> to vector<32x1xf32>
    %cst_12 = arith.constant 0.010416667 : f32
    %16 = vector.broadcast %cst_12 : f32 to vector<32x1xf32>
    %17 = arith.mulf %15, %16 : vector<32x1xf32>
    %18 = arith.mulf %12, %12 : vector<32x1xf32>
    %19 = arith.subf %17, %18 : vector<32x1xf32>
    %20 = vector.broadcast %12 : vector<32x1xf32> to vector<32x128xf32>
    %21 = arith.subf %6, %20 : vector<32x128xf32>
    %cst_13 = arith.constant 9.99999974E-6 : f32
    %22 = vector.broadcast %cst_13 : f32 to vector<32x1xf32>
    %23 = arith.addf %19, %22 : vector<32x1xf32>
    %24 = math.rsqrt %23 : vector<32x1xf32>
    %25 = vector.broadcast %24 : vector<32x1xf32> to vector<32x128xf32>
    %26 = arith.mulf %21, %25 : vector<32x128xf32>
    %27 = vector.broadcast %7 : vector<1x128xf32> to vector<32x128xf32>
    %28 = arith.mulf %26, %27 : vector<32x128xf32>
    %29 = vector.broadcast %8 : vector<1x128xf32> to vector<32x128xf32>
    %30 = arith.addf %28, %29 : vector<32x128xf32>
    %31 = arith.truncf %30 : vector<32x128xf32> to vector<32x128xbf16>
    %c0_14 = arith.constant 0 : index
    %c0_15 = arith.constant 0 : index
    %32 = vector.load %arg5[%c0_14, %c0_15] : memref<128x384xbf16, #tpu.memory_space<vmem>>, vector<128x384xbf16>
    %cst_16 = arith.constant dense<0.000000e+00> : vector<32x384xf32>
    %33 = tpu.matmul %31, %32, %cst_16 {dimension_numbers = #tpu.dot_dimension_numbers<[1], [0], [0], [1], [0, 0, 1, 1], [], []>} : vector<32x128xbf16>, vector<128x384xbf16>, vector<32x384xf32> -> vector<32x384xf32>
    %34 = vector.extract_strided_slice %33 {offsets = [0, 0], sizes = [32, 128], strides = [1, 1]} : vector<32x384xf32> to vector<32x128xf32>
    %35 = arith.truncf %34 : vector<32x128xf32> to vector<32x128xbf16>
    %36 = vector.extract_strided_slice %33 {offsets = [0, 128], sizes = [32, 128], strides = [1, 1]} : vector<32x384xf32> to vector<32x128xf32>
    %37 = arith.truncf %36 : vector<32x128xf32> to vector<32x128xbf16>
    %38 = vector.extract_strided_slice %33 {offsets = [0, 256], sizes = [32, 128], strides = [1, 1]} : vector<32x384xf32> to vector<32x128xf32>
    %39 = arith.truncf %38 : vector<32x128xf32> to vector<32x128xbf16>
    %40 = vector.extract_strided_slice %35 {offsets = [0, 0], sizes = [32, 32], strides = [1, 1]} : vector<32x128xbf16> to vector<32x32xbf16>
    %41 = vector.shape_cast %40 : vector<32x32xbf16> to vector<2x16x32xbf16>
    %42 = vector.extract_strided_slice %37 {offsets = [0, 0], sizes = [32, 32], strides = [1, 1]} : vector<32x128xbf16> to vector<32x32xbf16>
    %43 = vector.shape_cast %42 : vector<32x32xbf16> to vector<2x16x32xbf16>
    %44 = vector.extract_strided_slice %39 {offsets = [0, 0], sizes = [32, 32], strides = [1, 1]} : vector<32x128xbf16> to vector<32x32xbf16>
    %45 = vector.shape_cast %44 : vector<32x32xbf16> to vector<2x16x32xbf16>
    "tpu.trace_start"() <{level = 10 : i32, message = "bqd,bkd->bqk"}> : () -> ()
    %cst_17 = arith.constant dense<0.000000e+00> : vector<2x16x16xf32>
    %46 = tpu.matmul %41, %43, %cst_17 {dimension_numbers = #tpu.dot_dimension_numbers<[2], [2], [1], [1], [0, 0, 0, 1, 1, 1], [0], [0]>} : vector<2x16x32xbf16>, vector<2x16x32xbf16>, vector<2x16x16xf32> -> vector<2x16x16xf32>
    "tpu.trace_stop"() : () -> ()
    %cst_18 = arith.constant dense<0xFF800000> : vector<2x16xf32>
    %47 = vector.multi_reduction <maximumf>, %46, %cst_18 [2] : vector<2x16x16xf32> to vector<2x16xf32>
    %48 = vector.shape_cast %47 : vector<2x16xf32> to vector<2x16x1xf32>
    %49 = vector.broadcast %48 : vector<2x16x1xf32> to vector<2x16x16xf32>
    %50 = arith.subf %46, %49 : vector<2x16x16xf32>
    %51 = math.exp %50 : vector<2x16x16xf32>
    %cst_19 = arith.constant dense<0.000000e+00> : vector<2x16xf32>
    %52 = vector.multi_reduction <add>, %51, %cst_19 [2] : vector<2x16x16xf32> to vector<2x16xf32>
    %53 = vector.shape_cast %52 : vector<2x16xf32> to vector<2x16x1xf32>
    %54 = tpu.reciprocal %53 {approx = true} : vector<2x16x1xf32> -> vector<2x16x1xf32>
    %55 = vector.broadcast %54 : vector<2x16x1xf32> to vector<2x16x16xf32>
    %56 = arith.mulf %51, %55 : vector<2x16x16xf32>
    %57 = arith.truncf %56 : vector<2x16x16xf32> to vector<2x16x16xbf16>
    "tpu.trace_start"() <{level = 10 : i32, message = "bqk,bkd->bqd"}> : () -> ()
    %cst_20 = arith.constant dense<0.000000e+00> : vector<2x16x32xf32>
    %58 = tpu.matmul %57, %45, %cst_20 {dimension_numbers = #tpu.dot_dimension_numbers<[2], [1], [1], [2], [0, 0, 0, 1, 1, 2], [0], [0]>} : vector<2x16x16xbf16>, vector<2x16x32xbf16>, vector<2x16x32xf32> -> vector<2x16x32xf32>
    "tpu.trace_stop"() : () -> ()
    %59 = vector.shape_cast %58 : vector<2x16x32xf32> to vector<32x32xf32>
    %60 = arith.truncf %59 : vector<32x32xf32> to vector<32x32xbf16>
    %61 = vector.extract_strided_slice %35 {offsets = [0, 32], sizes = [32, 32], strides = [1, 1]} : vector<32x128xbf16> to vector<32x32xbf16>
    %62 = vector.shape_cast %61 : vector<32x32xbf16> to vector<2x16x32xbf16>
    %63 = vector.extract_strided_slice %37 {offsets = [0, 32], sizes = [32, 32], strides = [1, 1]} : vector<32x128xbf16> to vector<32x32xbf16>
    %64 = vector.shape_cast %63 : vector<32x32xbf16> to vector<2x16x32xbf16>
    %65 = vector.extract_strided_slice %39 {offsets = [0, 32], sizes = [32, 32], strides = [1, 1]} : vector<32x128xbf16> to vector<32x32xbf16>
    %66 = vector.shape_cast %65 : vector<32x32xbf16> to vector<2x16x32xbf16>
    "tpu.trace_start"() <{level = 10 : i32, message = "bqd,bkd->bqk"}> : () -> ()
    %cst_21 = arith.constant dense<0.000000e+00> : vector<2x16x16xf32>
    %67 = tpu.matmul %62, %64, %cst_21 {dimension_numbers = #tpu.dot_dimension_numbers<[2], [2], [1], [1], [0, 0, 0, 1, 1, 1], [0], [0]>} : vector<2x16x32xbf16>, vector<2x16x32xbf16>, vector<2x16x16xf32> -> vector<2x16x16xf32>
    "tpu.trace_stop"() : () -> ()
    %cst_22 = arith.constant dense<0xFF800000> : vector<2x16xf32>
    %68 = vector.multi_reduction <maximumf>, %67, %cst_22 [2] : vector<2x16x16xf32> to vector<2x16xf32>
    %69 = vector.shape_cast %68 : vector<2x16xf32> to vector<2x16x1xf32>
    %70 = vector.broadcast %69 : vector<2x16x1xf32> to vector<2x16x16xf32>
    %71 = arith.subf %67, %70 : vector<2x16x16xf32>
    %72 = math.exp %71 : vector<2x16x16xf32>
    %cst_23 = arith.constant dense<0.000000e+00> : vector<2x16xf32>
    %73 = vector.multi_reduction <add>, %72, %cst_23 [2] : vector<2x16x16xf32> to vector<2x16xf32>
    %74 = vector.shape_cast %73 : vector<2x16xf32> to vector<2x16x1xf32>
    %75 = tpu.reciprocal %74 {approx = true} : vector<2x16x1xf32> -> vector<2x16x1xf32>
    %76 = vector.broadcast %75 : vector<2x16x1xf32> to vector<2x16x16xf32>
    %77 = arith.mulf %72, %76 : vector<2x16x16xf32>
    %78 = arith.truncf %77 : vector<2x16x16xf32> to vector<2x16x16xbf16>
    "tpu.trace_start"() <{level = 10 : i32, message = "bqk,bkd->bqd"}> : () -> ()
    %cst_24 = arith.constant dense<0.000000e+00> : vector<2x16x32xf32>
    %79 = tpu.matmul %78, %66, %cst_24 {dimension_numbers = #tpu.dot_dimension_numbers<[2], [1], [1], [2], [0, 0, 0, 1, 1, 2], [0], [0]>} : vector<2x16x16xbf16>, vector<2x16x32xbf16>, vector<2x16x32xf32> -> vector<2x16x32xf32>
    "tpu.trace_stop"() : () -> ()
    %80 = vector.shape_cast %79 : vector<2x16x32xf32> to vector<32x32xf32>
    %81 = arith.truncf %80 : vector<32x32xf32> to vector<32x32xbf16>
    %82 = vector.extract_strided_slice %35 {offsets = [0, 64], sizes = [32, 32], strides = [1, 1]} : vector<32x128xbf16> to vector<32x32xbf16>
    %83 = vector.shape_cast %82 : vector<32x32xbf16> to vector<2x16x32xbf16>
    %84 = vector.extract_strided_slice %37 {offsets = [0, 64], sizes = [32, 32], strides = [1, 1]} : vector<32x128xbf16> to vector<32x32xbf16>
    %85 = vector.shape_cast %84 : vector<32x32xbf16> to vector<2x16x32xbf16>
    %86 = vector.extract_strided_slice %39 {offsets = [0, 64], sizes = [32, 32], strides = [1, 1]} : vector<32x128xbf16> to vector<32x32xbf16>
    %87 = vector.shape_cast %86 : vector<32x32xbf16> to vector<2x16x32xbf16>
    "tpu.trace_start"() <{level = 10 : i32, message = "bqd,bkd->bqk"}> : () -> ()
    %cst_25 = arith.constant dense<0.000000e+00> : vector<2x16x16xf32>
    %88 = tpu.matmul %83, %85, %cst_25 {dimension_numbers = #tpu.dot_dimension_numbers<[2], [2], [1], [1], [0, 0, 0, 1, 1, 1], [0], [0]>} : vector<2x16x32xbf16>, vector<2x16x32xbf16>, vector<2x16x16xf32> -> vector<2x16x16xf32>
    "tpu.trace_stop"() : () -> ()
    %cst_26 = arith.constant dense<0xFF800000> : vector<2x16xf32>
    %89 = vector.multi_reduction <maximumf>, %88, %cst_26 [2] : vector<2x16x16xf32> to vector<2x16xf32>
    %90 = vector.shape_cast %89 : vector<2x16xf32> to vector<2x16x1xf32>
    %91 = vector.broadcast %90 : vector<2x16x1xf32> to vector<2x16x16xf32>
    %92 = arith.subf %88, %91 : vector<2x16x16xf32>
    %93 = math.exp %92 : vector<2x16x16xf32>
    %cst_27 = arith.constant dense<0.000000e+00> : vector<2x16xf32>
    %94 = vector.multi_reduction <add>, %93, %cst_27 [2] : vector<2x16x16xf32> to vector<2x16xf32>
    %95 = vector.shape_cast %94 : vector<2x16xf32> to vector<2x16x1xf32>
    %96 = tpu.reciprocal %95 {approx = true} : vector<2x16x1xf32> -> vector<2x16x1xf32>
    %97 = vector.broadcast %96 : vector<2x16x1xf32> to vector<2x16x16xf32>
    %98 = arith.mulf %93, %97 : vector<2x16x16xf32>
    %99 = arith.truncf %98 : vector<2x16x16xf32> to vector<2x16x16xbf16>
    "tpu.trace_start"() <{level = 10 : i32, message = "bqk,bkd->bqd"}> : () -> ()
    %cst_28 = arith.constant dense<0.000000e+00> : vector<2x16x32xf32>
    %100 = tpu.matmul %99, %87, %cst_28 {dimension_numbers = #tpu.dot_dimension_numbers<[2], [1], [1], [2], [0, 0, 0, 1, 1, 2], [0], [0]>} : vector<2x16x16xbf16>, vector<2x16x32xbf16>, vector<2x16x32xf32> -> vector<2x16x32xf32>
    "tpu.trace_stop"() : () -> ()
    %101 = vector.shape_cast %100 : vector<2x16x32xf32> to vector<32x32xf32>
    %102 = arith.truncf %101 : vector<32x32xf32> to vector<32x32xbf16>
    %cst_29 = arith.constant 0.000000e+00 : bf16
    %103 = vector.broadcast %cst_29 : bf16 to vector<32x32xbf16>
    %104 = tpu.concatenate %60, %81, %102, %103 in 1 : vector<32x32xbf16>, vector<32x32xbf16>, vector<32x32xbf16>, vector<32x32xbf16> -> vector<32x128xbf16>
    %c0_30 = arith.constant 0 : index
    %c0_31 = arith.constant 0 : index
    %105 = vector.load %arg6[%c0_30, %c0_31] : memref<128x128xbf16, #tpu.memory_space<vmem>>, vector<128x128xbf16>
    %cst_32 = arith.constant dense<0.000000e+00> : vector<32x128xf32>
    %106 = tpu.matmul %104, %105, %cst_32 {dimension_numbers = #tpu.dot_dimension_numbers<[1], [0], [0], [1], [0, 0, 1, 1], [], []>} : vector<32x128xbf16>, vector<128x128xbf16>, vector<32x128xf32> -> vector<32x128xf32>
    %107 = arith.addf %6, %106 : vector<32x128xf32>
    %c0_33 = arith.constant 0 : index
    %c0_34 = arith.constant 0 : index
    %108 = vector.load %arg7[%c0_33, %c0_34] : memref<1x128xf32, #tpu.memory_space<vmem>>, vector<1x128xf32>
    %109 = vector.broadcast %108 : vector<1x128xf32> to vector<32x128xf32>
    %110 = arith.addf %107, %109 : vector<32x128xf32>
    %c0_35 = arith.constant 0 : index
    %c0_36 = arith.constant 0 : index
    %111 = vector.load %arg8[%c0_35, %c0_36] : memref<1x128xf32, #tpu.memory_space<vmem>>, vector<1x128xf32>
    %c0_37 = arith.constant 0 : index
    %c0_38 = arith.constant 0 : index
    %112 = vector.load %arg9[%c0_37, %c0_38] : memref<1x128xf32, #tpu.memory_space<vmem>>, vector<1x128xf32>
    %cst_39 = arith.constant dense<0.000000e+00> : vector<32xf32>
    %113 = vector.multi_reduction <add>, %110, %cst_39 [1] : vector<32x128xf32> to vector<32xf32>
    %114 = vector.shape_cast %113 : vector<32xf32> to vector<32x1xf32>
    %cst_40 = arith.constant 0.010416667 : f32
    %115 = vector.broadcast %cst_40 : f32 to vector<32x1xf32>
    %116 = arith.mulf %114, %115 : vector<32x1xf32>
    %117 = arith.mulf %110, %110 : vector<32x128xf32>
    %cst_41 = arith.constant dense<0.000000e+00> : vector<32xf32>
    %118 = vector.multi_reduction <add>, %117, %cst_41 [1] : vector<32x128xf32> to vector<32xf32>
    %119 = vector.shape_cast %118 : vector<32xf32> to vector<32x1xf32>
    %cst_42 = arith.constant 0.010416667 : f32
    %120 = vector.broadcast %cst_42 : f32 to vector<32x1xf32>
    %121 = arith.mulf %119, %120 : vector<32x1xf32>
    %122 = arith.mulf %116, %116 : vector<32x1xf32>
    %123 = arith.subf %121, %122 : vector<32x1xf32>
    %124 = vector.broadcast %116 : vector<32x1xf32> to vector<32x128xf32>
    %125 = arith.subf %110, %124 : vector<32x128xf32>
    %cst_43 = arith.constant 9.99999974E-6 : f32
    %126 = vector.broadcast %cst_43 : f32 to vector<32x1xf32>
    %127 = arith.addf %123, %126 : vector<32x1xf32>
    %128 = math.rsqrt %127 : vector<32x1xf32>
    %129 = vector.broadcast %128 : vector<32x1xf32> to vector<32x128xf32>
    %130 = arith.mulf %125, %129 : vector<32x128xf32>
    %131 = vector.broadcast %111 : vector<1x128xf32> to vector<32x128xf32>
    %132 = arith.mulf %130, %131 : vector<32x128xf32>
    %133 = vector.broadcast %112 : vector<1x128xf32> to vector<32x128xf32>
    %134 = arith.addf %132, %133 : vector<32x128xf32>
    %135 = arith.truncf %134 : vector<32x128xf32> to vector<32x128xbf16>
    %c0_44 = arith.constant 0 : index
    %c0_45 = arith.constant 0 : index
    %136 = vector.load %arg10[%c0_44, %c0_45] : memref<128x384xbf16, #tpu.memory_space<vmem>>, vector<128x384xbf16>
    %cst_46 = arith.constant dense<0.000000e+00> : vector<32x384xf32>
    %137 = tpu.matmul %135, %136, %cst_46 {dimension_numbers = #tpu.dot_dimension_numbers<[1], [0], [0], [1], [0, 0, 1, 1], [], []>} : vector<32x128xbf16>, vector<128x384xbf16>, vector<32x384xf32> -> vector<32x384xf32>
    %c0_47 = arith.constant 0 : index
    %c0_48 = arith.constant 0 : index
    %138 = vector.load %arg11[%c0_47, %c0_48] : memref<1x384xf32, #tpu.memory_space<vmem>>, vector<1x384xf32>
    %139 = vector.broadcast %138 : vector<1x384xf32> to vector<32x384xf32>
    %140 = arith.addf %137, %139 : vector<32x384xf32>
    %141 = arith.mulf %140, %140 : vector<32x384xf32>
    %142 = arith.mulf %140, %141 : vector<32x384xf32>
    %cst_49 = arith.constant 4.471500e-02 : f32
    %143 = vector.broadcast %cst_49 : f32 to vector<32x384xf32>
    %144 = arith.mulf %143, %142 : vector<32x384xf32>
    %145 = arith.addf %140, %144 : vector<32x384xf32>
    %cst_50 = arith.constant 0.797884583 : f32
    %146 = vector.broadcast %cst_50 : f32 to vector<32x384xf32>
    %147 = arith.mulf %146, %145 : vector<32x384xf32>
    %148 = math.tanh %147 : vector<32x384xf32>
    %cst_51 = arith.constant 1.000000e+00 : f32
    %149 = vector.broadcast %cst_51 : f32 to vector<32x384xf32>
    %150 = arith.addf %149, %148 : vector<32x384xf32>
    %cst_52 = arith.constant 5.000000e-01 : f32
    %151 = vector.broadcast %cst_52 : f32 to vector<32x384xf32>
    %152 = arith.mulf %151, %150 : vector<32x384xf32>
    %153 = arith.mulf %140, %152 : vector<32x384xf32>
    %154 = arith.truncf %153 : vector<32x384xf32> to vector<32x384xbf16>
    %c0_53 = arith.constant 0 : index
    %c0_54 = arith.constant 0 : index
    %155 = vector.load %arg12[%c0_53, %c0_54] : memref<384x128xbf16, #tpu.memory_space<vmem>>, vector<384x128xbf16>
    %cst_55 = arith.constant dense<0.000000e+00> : vector<32x128xf32>
    %156 = tpu.matmul %154, %155, %cst_55 {dimension_numbers = #tpu.dot_dimension_numbers<[1], [0], [0], [1], [0, 0, 1, 1], [], []>} : vector<32x384xbf16>, vector<384x128xbf16>, vector<32x128xf32> -> vector<32x128xf32>
    %157 = arith.addf %110, %156 : vector<32x128xf32>
    %c0_56 = arith.constant 0 : index
    %c0_57 = arith.constant 0 : index
    %158 = vector.load %arg13[%c0_56, %c0_57] : memref<1x128xf32, #tpu.memory_space<vmem>>, vector<1x128xf32>
    %159 = vector.broadcast %158 : vector<1x128xf32> to vector<32x128xf32>
    %160 = arith.addf %157, %159 : vector<32x128xf32>
    %161 = arith.truncf %160 : vector<32x128xf32> to vector<32x128xbf16>
    %c0_58 = arith.constant 0 : index
    %c0_59 = arith.constant 0 : index
    %162 = vector.load %arg14[%c0_58, %c0_59] : memref<8x32xbf16, #tpu.memory_space<vmem>>, vector<8x32xbf16>
    %cst_60 = arith.constant dense<0.000000e+00> : vector<8x128xf32>
    %163 = tpu.matmul %162, %161, %cst_60 {dimension_numbers = #tpu.dot_dimension_numbers<[1], [0], [0], [1], [0, 0, 1, 1], [], []>} : vector<8x32xbf16>, vector<32x128xbf16>, vector<8x128xf32> -> vector<8x128xf32>
    %cst_61 = arith.constant 0.000000e+00 : f32
    %164 = vector.broadcast %cst_61 : f32 to vector<2x128xf32>
    %165 = vector.extract_strided_slice %163 {offsets = [0, 0], sizes = [2, 128], strides = [1, 1]} : vector<8x128xf32> to vector<2x128xf32>
    %166 = arith.truncf %165 : vector<2x128xf32> to vector<2x128xbf16>
    %c0_62 = arith.constant 0 : index
    %c0_63 = arith.constant 0 : index
    %c0_64 = arith.constant 0 : index
    %167 = vector.load %arg15[%c0_62, %c0_63, %c0_64] : memref<4x128x128xbf16, #tpu.memory_space<vmem>>, vector<1x128x128xbf16>
    %168 = vector.shape_cast %167 : vector<1x128x128xbf16> to vector<128x128xbf16>
    %cst_65 = arith.constant dense<0.000000e+00> : vector<2x128xf32>
    %169 = tpu.matmul %166, %168, %cst_65 {dimension_numbers = #tpu.dot_dimension_numbers<[1], [0], [0], [1], [0, 0, 1, 1], [], []>} : vector<2x128xbf16>, vector<128x128xbf16>, vector<2x128xf32> -> vector<2x128xf32>
    %170 = arith.addf %164, %169 : vector<2x128xf32>
    %171 = vector.extract_strided_slice %163 {offsets = [2, 0], sizes = [2, 128], strides = [1, 1]} : vector<8x128xf32> to vector<2x128xf32>
    %172 = arith.truncf %171 : vector<2x128xf32> to vector<2x128xbf16>
    %c1 = arith.constant 1 : index
    %c0_66 = arith.constant 0 : index
    %c0_67 = arith.constant 0 : index
    %173 = vector.load %arg15[%c1, %c0_66, %c0_67] : memref<4x128x128xbf16, #tpu.memory_space<vmem>>, vector<1x128x128xbf16>
    %174 = vector.shape_cast %173 : vector<1x128x128xbf16> to vector<128x128xbf16>
    %cst_68 = arith.constant dense<0.000000e+00> : vector<2x128xf32>
    %175 = tpu.matmul %172, %174, %cst_68 {dimension_numbers = #tpu.dot_dimension_numbers<[1], [0], [0], [1], [0, 0, 1, 1], [], []>} : vector<2x128xbf16>, vector<128x128xbf16>, vector<2x128xf32> -> vector<2x128xf32>
    %176 = arith.addf %170, %175 : vector<2x128xf32>
    %177 = vector.extract_strided_slice %163 {offsets = [4, 0], sizes = [2, 128], strides = [1, 1]} : vector<8x128xf32> to vector<2x128xf32>
    %178 = arith.truncf %177 : vector<2x128xf32> to vector<2x128xbf16>
    %c2 = arith.constant 2 : index
    %c0_69 = arith.constant 0 : index
    %c0_70 = arith.constant 0 : index
    %179 = vector.load %arg15[%c2, %c0_69, %c0_70] : memref<4x128x128xbf16, #tpu.memory_space<vmem>>, vector<1x128x128xbf16>
    %180 = vector.shape_cast %179 : vector<1x128x128xbf16> to vector<128x128xbf16>
    %cst_71 = arith.constant dense<0.000000e+00> : vector<2x128xf32>
    %181 = tpu.matmul %178, %180, %cst_71 {dimension_numbers = #tpu.dot_dimension_numbers<[1], [0], [0], [1], [0, 0, 1, 1], [], []>} : vector<2x128xbf16>, vector<128x128xbf16>, vector<2x128xf32> -> vector<2x128xf32>
    %182 = arith.addf %176, %181 : vector<2x128xf32>
    %183 = vector.extract_strided_slice %163 {offsets = [6, 0], sizes = [2, 128], strides = [1, 1]} : vector<8x128xf32> to vector<2x128xf32>
    %184 = arith.truncf %183 : vector<2x128xf32> to vector<2x128xbf16>
    %c3 = arith.constant 3 : index
    %c0_72 = arith.constant 0 : index
    %c0_73 = arith.constant 0 : index
    %185 = vector.load %arg15[%c3, %c0_72, %c0_73] : memref<4x128x128xbf16, #tpu.memory_space<vmem>>, vector<1x128x128xbf16>
    %186 = vector.shape_cast %185 : vector<1x128x128xbf16> to vector<128x128xbf16>
    %cst_74 = arith.constant dense<0.000000e+00> : vector<2x128xf32>
    %187 = tpu.matmul %184, %186, %cst_74 {dimension_numbers = #tpu.dot_dimension_numbers<[1], [0], [0], [1], [0, 0, 1, 1], [], []>} : vector<2x128xbf16>, vector<128x128xbf16>, vector<2x128xf32> -> vector<2x128xf32>
    %188 = arith.addf %182, %187 : vector<2x128xf32>
    %c0_75 = arith.constant 0 : index
    %c0_76 = arith.constant 0 : index
    %189 = vector.load %arg16[%c0_75, %c0_76] : memref<1x128xf32, #tpu.memory_space<vmem>>, vector<1x128xf32>
    %190 = vector.broadcast %189 : vector<1x128xf32> to vector<2x128xf32>
    %191 = arith.addf %188, %190 : vector<2x128xf32>
    %c0_77 = arith.constant 0 : index
    %c0_78 = arith.constant 0 : index
    %192 = vector.load %arg17[%c0_77, %c0_78] : memref<2x128xf32, #tpu.memory_space<vmem>>, vector<2x128xf32>
    tpu.vector_store %arg17[%c0_77, %c0_78], %191 {strides = array<i32>} : memref<2x128xf32, #tpu.memory_space<vmem>>, vector<2x128xf32>,
    return
  }
}

</mosaic_0001>

<llo_original>
// kernel: swin_tiny_forward.1
$region0: #{swin_tiny_forward.1}
  #allocation0 [shape = 'u32[]', space=smem, size = 0x4, offset = 0x4, fixed_abs, tag = 'smem constant byte address 0x4 - core index']
  #allocation1 [shape = 'u32[144,128]{1,0:T(1,128)}', space=vmem, size = 0x12000, scoped, tag = 'internal scratch']
  %s0 = inlined_call_operand.vmem [shape: f32[32,128], index: 0, kind: input, shape index: {}]
  %s1 = inlined_call_operand.vmem [shape: bf16[128,128], index: 1, kind: input, shape index: {}]
  %s2 = inlined_call_operand.vmem [shape: f32[1,128], index: 2, kind: input, shape index: {}]
  %s3 = inlined_call_operand.vmem [shape: f32[1,128], index: 3, kind: input, shape index: {}]
  %s4 = inlined_call_operand.vmem [shape: f32[1,128], index: 4, kind: input, shape index: {}]
  %s5 = inlined_call_operand.vmem [shape: bf16[128,384], index: 5, kind: input, shape index: {}]
  %s6 = inlined_call_operand.vmem [shape: bf16[128,128], index: 6, kind: input, shape index: {}]
  %s7 = inlined_call_operand.vmem [shape: f32[1,128], index: 7, kind: input, shape index: {}]
  %s8 = inlined_call_operand.vmem [shape: f32[1,128], index: 8, kind: input, shape index: {}]
  %s9 = inlined_call_operand.vmem [shape: f32[1,128], index: 9, kind: input, shape index: {}]
  %s10 = inlined_call_operand.vmem [shape: bf16[128,384], index: 10, kind: input, shape index: {}]
  %s11 = inlined_call_operand.vmem [shape: f32[1,384], index: 11, kind: input, shape index: {}]
  %s12 = inlined_call_operand.vmem [shape: bf16[384,128], index: 12, kind: input, shape index: {}]
  %s13 = inlined_call_operand.vmem [shape: f32[1,128], index: 13, kind: input, shape index: {}]
  %s14 = inlined_call_operand.vmem [shape: bf16[8,32], index: 14, kind: input, shape index: {}]
  %s15 = inlined_call_operand.vmem [shape: bf16[4,128,128], index: 15, kind: input, shape index: {}]
  %s16 = inlined_call_operand.vmem [shape: f32[1,128], index: 16, kind: input, shape index: {}]
  %s17 = inlined_call_operand.hbm [shape: f32[2,128], index: 17, kind: output, shape index: {}]
  %s18 = sld [smem:[#allocation0]]
  $region78: #{swin_tiny_forward.1} parent=0
    _
  %s20 = ssub.s32 1, %s18
  %s21 = scalar_select 0, %s20, %s18
  $region1: #{swin_tiny_forward.1} parent=0
    #allocation2 [shape = 'u8[1024]{0}', space=vmem, size = 0x400, scoped, tag = 'output window, operand 0, single buffered']
    #allocation3 [shape = 's32[1]{0}', space=sflag, size = 0x4, scoped, tag = 'scoped memory for swin_tiny_forward.1']
    %22 = vsyncpa [#allocation3], 0
    // Predicated region
    $region2: #{swin_tiny_forward.1} parent=1 // pred_check
      _
    $region3: #{swin_tiny_forward.1} parent=1 // pred_check_branch
      %24 = sbr.rel (0) target = $region5
    $region4: #{swin_tiny_forward.1} parent=1 // pred_region
      _
    $region5: #{swin_tiny_forward.1} parent=1 // pred_fallthru
      _
    // Predicated region
    $region6: #{swin_tiny_forward.1} parent=1 // pred_check
      _
    $region7: #{swin_tiny_forward.1} parent=1 // pred_check_branch
      %26 = sbr.rel (0) target = $region9
    $region8: #{swin_tiny_forward.1} parent=1 // pred_region
      _
    $region9: #{swin_tiny_forward.1} parent=1 // pred_fallthru
      _
    // Predicated region
    $region10: #{swin_tiny_forward.1} parent=1 // pred_check
      _
    $region11: #{swin_tiny_forward.1} parent=1 // pred_check_branch
      %28 = sbr.rel (0) target = $region13
    $region12: #{swin_tiny_forward.1} parent=1 // pred_region
      _
    $region13: #{swin_tiny_forward.1} parent=1 // pred_fallthru
      _
    // Predicated region
    $region14: #{swin_tiny_forward.1} parent=1 // pred_check
      _
    $region15: #{swin_tiny_forward.1} parent=1 // pred_check_branch
      %30 = sbr.rel (0) target = $region17
    $region16: #{swin_tiny_forward.1} parent=1 // pred_region
      _
    $region17: #{swin_tiny_forward.1} parent=1 // pred_fallthru
      _
    // Predicated region
    $region18: #{swin_tiny_forward.1} parent=1 // pred_check
      _
    $region19: #{swin_tiny_forward.1} parent=1 // pred_check_branch
      %32 = sbr.rel (0) target = $region21
    $region20: #{swin_tiny_forward.1} parent=1 // pred_region
      _
    $region21: #{swin_tiny_forward.1} parent=1 // pred_fallthru
      _
    // Predicated region
    $region22: #{swin_tiny_forward.1} parent=1 // pred_check
      _
    $region23: #{swin_tiny_forward.1} parent=1 // pred_check_branch
      %34 = sbr.rel (0) target = $region25
    $region24: #{swin_tiny_forward.1} parent=1 // pred_region
      _
    $region25: #{swin_tiny_forward.1} parent=1 // pred_fallthru
      _
    // Predicated region
    $region26: #{swin_tiny_forward.1} parent=1 // pred_check
      _
    $region27: #{swin_tiny_forward.1} parent=1 // pred_check_branch
      %36 = sbr.rel (0) target = $region29
    $region28: #{swin_tiny_forward.1} parent=1 // pred_region
      _
    $region29: #{swin_tiny_forward.1} parent=1 // pred_fallthru
      _
    // Predicated region
    $region30: #{swin_tiny_forward.1} parent=1 // pred_check
      _
    $region31: #{swin_tiny_forward.1} parent=1 // pred_check_branch
      %38 = sbr.rel (0) target = $region33
    $region32: #{swin_tiny_forward.1} parent=1 // pred_region
      _
    $region33: #{swin_tiny_forward.1} parent=1 // pred_fallthru
      _
    // Predicated region
    $region34: #{swin_tiny_forward.1} parent=1 // pred_check
      _
    $region35: #{swin_tiny_forward.1} parent=1 // pred_check_branch
      %40 = sbr.rel (0) target = $region37
    $region36: #{swin_tiny_forward.1} parent=1 // pred_region
      _
    $region37: #{swin_tiny_forward.1} parent=1 // pred_fallthru
      _
    // Predicated region
    $region38: #{swin_tiny_forward.1} parent=1 // pred_check
      _
    $region39: #{swin_tiny_forward.1} parent=1 // pred_check_branch
      %42 = sbr.rel (0) target = $region41
    $region40: #{swin_tiny_forward.1} parent=1 // pred_region
      _
    $region41: #{swin_tiny_forward.1} parent=1 // pred_fallthru
      _
    // Predicated region
    $region42: #{swin_tiny_forward.1} parent=1 // pred_check
      _
    $region43: #{swin_tiny_forward.1} parent=1 // pred_check_branch
      %44 = sbr.rel (0) target = $region45
    $region44: #{swin_tiny_forward.1} parent=1 // pred_region
      _
    $region45: #{swin_tiny_forward.1} parent=1 // pred_fallthru
      _
    // Predicated region
    $region46: #{swin_tiny_forward.1} parent=1 // pred_check
      _
    $region47: #{swin_tiny_forward.1} parent=1 // pred_check_branch
      %46 = sbr.rel (0) target = $region49
    $region48: #{swin_tiny_forward.1} parent=1 // pred_region
      _
    $region49: #{swin_tiny_forward.1} parent=1 // pred_fallthru
      _
    // Predicated region
    $region50: #{swin_tiny_forward.1} parent=1 // pred_check
      _
    $region51: #{swin_tiny_forward.1} parent=1 // pred_check_branch
      %48 = sbr.rel (0) target = $region53
    $region52: #{swin_tiny_forward.1} parent=1 // pred_region
      _
    $region53: #{swin_tiny_forward.1} parent=1 // pred_fallthru
      _
    // Predicated region
    $region54: #{swin_tiny_forward.1} parent=1 // pred_check
      _
    $region55: #{swin_tiny_forward.1} parent=1 // pred_check_branch
      %50 = sbr.rel (0) target = $region57
    $region56: #{swin_tiny_forward.1} parent=1 // pred_region
      _
    $region57: #{swin_tiny_forward.1} parent=1 // pred_fallthru
      _
    // Predicated region
    $region58: #{swin_tiny_forward.1} parent=1 // pred_check
      _
    $region59: #{swin_tiny_forward.1} parent=1 // pred_check_branch
      %52 = sbr.rel (0) target = $region61
    $region60: #{swin_tiny_forward.1} parent=1 // pred_region
      _
    $region61: #{swin_tiny_forward.1} parent=1 // pred_fallthru
      _
    // Predicated region
    $region62: #{swin_tiny_forward.1} parent=1 // pred_check
      _
    $region63: #{swin_tiny_forward.1} parent=1 // pred_check_branch
      %54 = sbr.rel (0) target = $region65
    $region64: #{swin_tiny_forward.1} parent=1 // pred_region
      _
    $region65: #{swin_tiny_forward.1} parent=1 // pred_fallthru
      _
    // Predicated region
    $region66: #{swin_tiny_forward.1} parent=1 // pred_check
      _
    $region67: #{swin_tiny_forward.1} parent=1 // pred_check_branch
      %56 = sbr.rel (0) target = $region69
    $region68: #{swin_tiny_forward.1} parent=1 // pred_region
      _
    $region69: #{swin_tiny_forward.1} parent=1 // pred_fallthru
      _
    %v58 = vld [vmem:[%s0] sm:$0xff]
    %v59 = vld [vmem:[%s0 + $0x8] sm:$0xff]
    %v60 = vld [vmem:[%s0 + $0x10] sm:$0xff]
    %v61 = vld [vmem:[%s0 + $0x18] sm:$0xff]
    %v62 = vpack.c.bf16 %v59, %v58
    %v63 = vpack.c.bf16 %v61, %v60
    %v64 = vld [vmem:[%s1] sm:$0xf]
    %v65 = vld [vmem:[%s1 + $0x4] sm:$0xf]
    %v66 = vld [vmem:[%s1 + $0x8] sm:$0xf]
    %v67 = vld [vmem:[%s1 + $0xc] sm:$0xf]
    %v68 = vld [vmem:[%s1 + $0x10] sm:$0xf]
    %v69 = vld [vmem:[%s1 + $0x14] sm:$0xf]
    %v70 = vld [vmem:[%s1 + $0x18] sm:$0xf]
    %v71 = vld [vmem:[%s1 + $0x1c] sm:$0xf]
    %v72 = vld [vmem:[%s1 + $0x20] sm:$0xf]
    %v73 = vld [vmem:[%s1 + $0x24] sm:$0xf]
    %v74 = vld [vmem:[%s1 + $0x28] sm:$0xf]
    %v75 = vld [vmem:[%s1 + $0x2c] sm:$0xf]
    %v76 = vld [vmem:[%s1 + $0x30] sm:$0xf]
    %v77 = vld [vmem:[%s1 + $0x34] sm:$0xf]
    %v78 = vld [vmem:[%s1 + $0x38] sm:$0xf]
    %v79 = vld [vmem:[%s1 + $0x3c] sm:$0xf]
    %v80 = vld [vmem:[%s2] sm:$0x1]
    %v82 = vlaneseq
    %v83 = vshrl.u32 %v82, 7
    %v84 = vsub.s32 0, %v83
    %v85 = vrot.slane %v80, %v84
    %v103 = vunpack.c.l.b16 %v64
    %v104 = vunpack.c.l.b16 %v65
    %v105 = vunpack.c.l.b16 %v66
    %v106 = vunpack.c.l.b16 %v67
    %v107 = vunpack.c.l.b16 %v68
    %v108 = vunpack.c.l.b16 %v69
    %v109 = vunpack.c.l.b16 %v70
    %v110 = vunpack.c.l.b16 %v71
    %v111 = vunpack.c.l.b16 %v72
    %v112 = vunpack.c.l.b16 %v73
    %v113 = vunpack.c.l.b16 %v74
    %v114 = vunpack.c.l.b16 %v75
    %v115 = vunpack.c.l.b16 %v76
    %v116 = vunpack.c.l.b16 %v77
    %v117 = vunpack.c.l.b16 %v78
    %v118 = vunpack.c.l.b16 %v79
    %v119 = vpack.c.b16 %v104, %v103
    %v120 = vpack.c.b16 %v106, %v105
    %v121 = vpack.c.b16 %v108, %v107
    %v122 = vpack.c.b16 %v110, %v109
    %v123 = vpack.c.b16 %v112, %v111
    %v124 = vpack.c.b16 %v114, %v113
    %v125 = vpack.c.b16 %v116, %v115
    %v126 = vpack.c.b16 %v118, %v117
    %135 = vmatprep.subr.bf16.mxu0 0
    %136 = vmatpush1.bf16.msra.mxu0 %v126
    %137 = vmatprep.subr.bf16.mxu0 0
    %138 = vmatpush1.bf16.msra.mxu0 %v125
    %139 = vmatprep.subr.bf16.mxu0 0
    %140 = vmatpush1.bf16.msra.mxu0 %v124
    %141 = vmatprep.subr.bf16.mxu0 0
    %142 = vmatpush1.bf16.msra.mxu0 %v123
    %143 = vmatprep.subr.bf16.mxu0 0
    %144 = vmatpush1.bf16.msra.mxu0 %v122
    %145 = vmatprep.subr.bf16.mxu0 0
    %146 = vmatpush1.bf16.msra.mxu0 %v121
    %147 = vmatprep.subr.bf16.mxu0 0
    %148 = vmatpush1.bf16.msra.mxu0 %v120
    %149 = vmatprep.subr.bf16.mxu0 0
    %150 = vmatpush1.bf16.msra.mxu0 %v119
    %151 = vmatprep.subr.bf16.mxu0 0
    %152 = vmatpush2.bf16.msra.mxu0 0
    %153 = vmatprep.subr.bf16.mxu0 0
    %154 = vmatpush2.bf16.msra.mxu0 0
    %155 = vmatprep.subr.bf16.mxu0 0
    %156 = vmatpush2.bf16.msra.mxu0 0
    %157 = vmatprep.subr.bf16.mxu0 0
    %158 = vmatpush2.bf16.msra.mxu0 0
    %159 = vmatprep.subr.bf16.mxu0 0
    %160 = vmatpush2.bf16.msra.mxu0 0
    %161 = vmatprep.subr.bf16.mxu0 0
    %162 = vmatpush2.bf16.msra.mxu0 0
    %163 = vmatprep.subr.bf16.mxu0 0
    %164 = vmatpush2.bf16.msra.mxu0 0
    %165 = vmatprep.subr.bf16.mxu0 0
    %166 = vmatpush2.bf16.msra.mxu0 0
    %167 = vmatprep.mubr.bf16.mxu0 0
    %168 = vmatmul.mubr.bf16.gmra.mxu0 %v62
    %v169 = vpop.f32.mrf.mxu0
    %v170 = vadd.f32 %v85, %v169
    %v171 = vpop.f32.mrf.mxu0
    %v172 = vpop.f32.mrf.mxu0
    %v173 = vadd.f32 %v85, %v172
    %v174 = vpop.f32.mrf.mxu0
    %175 = vmatprep.mubr.bf16.mxu0 0
    %176 = vmatmul.mubr.bf16.gmra.mxu0 %v63
    %v177 = vpop.f32.mrf.mxu0
    %v178 = vadd.f32 %v85, %v177
    %v179 = vpop.f32.mrf.mxu0
    %v180 = vpop.f32.mrf.mxu0
    %v181 = vadd.f32 %v85, %v180
    %v182 = vpop.f32.mrf.mxu0
    %183 = vdwg.mxu0
    %v184 = vld [vmem:[%s3] sm:$0x1]
    %v185 = vld [vmem:[%s4] sm:$0x1]
    %186 = vadd.xlane.f32.xlu0 %v170
    %v187 = vpop.xlane.xlu0 %186
    %188 = vadd.xlane.f32.xlu0 %v173
    %v189 = vpop.xlane.xlu0 %188
    %190 = vadd.xlane.f32.xlu0 %v178
    %v191 = vpop.xlane.xlu0 %190
    %192 = vadd.xlane.f32.xlu0 %v181
    %v193 = vpop.xlane.xlu0 %192
    %v194 = vmul.f32 %v187, 0.010416667
    %v195 = vmul.f32 %v189, 0.010416667
    %v196 = vmul.f32 %v191, 0.010416667
    %v197 = vmul.f32 %v193, 0.010416667
    %v198 = vmul.f32 %v170, %v170
    %v199 = vmul.f32 %v173, %v173
    %v200 = vmul.f32 %v178, %v178
    %v201 = vmul.f32 %v181, %v181
    %202 = vadd.xlane.f32.xlu0 %v198
    %v203 = vpop.xlane.xlu0 %202
    %204 = vadd.xlane.f32.xlu0 %v199
    %v205 = vpop.xlane.xlu0 %204
    %206 = vadd.xlane.f32.xlu0 %v200
    %v207 = vpop.xlane.xlu0 %206
    %208 = vadd.xlane.f32.xlu0 %v201
    %v209 = vpop.xlane.xlu0 %208
    %v210 = vmul.f32 %v203, 0.010416667
    %v211 = vmul.f32 %v205, 0.010416667
    %v212 = vmul.f32 %v207, 0.010416667
    %v213 = vmul.f32 %v209, 0.010416667
    %v214 = vmul.f32 %v194, %v194
    %v215 = vmul.f32 %v195, %v195
    %v216 = vmul.f32 %v196, %v196
    %v217 = vmul.f32 %v197, %v197
    %v218 = vsub.f32 %v210, %v214
    %v219 = vsub.f32 %v211, %v215
    %v220 = vsub.f32 %v212, %v216
    %v221 = vsub.f32 %v213, %v217
    %v222 = vsub.f32 %v170, %v194
    %v223 = vsub.f32 %v173, %v195
    %v224 = vsub.f32 %v178, %v196
    %v225 = vsub.f32 %v181, %v197
    %v226 = vadd.f32 %v218, 1e-05
    %v227 = vadd.f32 %v219, 1e-05
    %v228 = vadd.f32 %v220, 1e-05
    %v229 = vadd.f32 %v221, 1e-05
    %v230 = vrsqrt.pop %v226
    %v231 = vrsqrt.pop %v227
    %v232 = vrsqrt.pop %v228
    %v233 = vrsqrt.pop %v229
    %v234 = vmul.f32 %v222, %v230
    %v235 = vmul.f32 %v223, %v231
    %v236 = vmul.f32 %v224, %v232
    %v237 = vmul.f32 %v225, %v233
    %v239 = vlaneseq
    %v240 = vshrl.u32 %v239, 7
    %v241 = vsub.s32 0, %v240
    %v242 = vrot.slane %v184, %v241
    %v244 = vmul.f32 %v234, %v242
    %v245 = vmul.f32 %v235, %v242
    %v246 = vmul.f32 %v236, %v242
    %v247 = vmul.f32 %v237, %v242
    %v249 = vlaneseq
    %v250 = vshrl.u32 %v249, 7
    %v251 = vsub.s32 0, %v250
    %v252 = vrot.slane %v185, %v251
    %v254 = vadd.f32 %v244, %v252
    %v255 = vadd.f32 %v245, %v252
    %v256 = vadd.f32 %v246, %v252
    %v257 = vadd.f32 %v247, %v252
    %v258 = vpack.c.bf16 %v255, %v254
    %v259 = vpack.c.bf16 %v257, %v256
    %v260 = vld [vmem:[%s5] sm:$0xff]
    %v261 = vld [vmem:[%s5 + $0x8] sm:$0xf]
    %v262 = vld [vmem:[%s5 + $0xc] sm:$0xff]
    %v263 = vld [vmem:[%s5 + $0x14] sm:$0xf]
    %v264 = vld [vmem:[%s5 + $0x18] sm:$0xff]
    %v265 = vld [vmem:[%s5 + $0x20] sm:$0xf]
    %v266 = vld [vmem:[%s5 + $0x24] sm:$0xff]
    %v267 = vld [vmem:[%s5 + $0x2c] sm:$0xf]
    %v268 = vld [vmem:[%s5 + $0x30] sm:$0xff]
    %v269 = vld [vmem:[%s5 + $0x38] sm:$0xf]
    %v270 = vld [vmem:[%s5 + $0x3c] sm:$0xff]
    %v271 = vld [vmem:[%s5 + $0x44] sm:$0xf]
    %v272 = vld [vmem:[%s5 + $0x48] sm:$0xff]
    %v273 = vld [vmem:[%s5 + $0x50] sm:$0xf]
    %v274 = vld [vmem:[%s5 + $0x54] sm:$0xff]
    %v275 = vld [vmem:[%s5 + $0x5c] sm:$0xf]
    %v276 = vld [vmem:[%s5 + $0x60] sm:$0xff]
    %v277 = vld [vmem:[%s5 + $0x68] sm:$0xf]
    %v278 = vld [vmem:[%s5 + $0x6c] sm:$0xff]
    %v279 = vld [vmem:[%s5 + $0x74] sm:$0xf]
    %v280 = vld [vmem:[%s5 + $0x78] sm:$0xff]
    %v281 = vld [vmem:[%s5 + $0x80] sm:$0xf]
    %v282 = vld [vmem:[%s5 + $0x84] sm:$0xff]
    %v283 = vld [vmem:[%s5 + $0x8c] sm:$0xf]
    %v284 = vld [vmem:[%s5 + $0x90] sm:$0xff]
    %v285 = vld [vmem:[%s5 + $0x98] sm:$0xf]
    %v286 = vld [vmem:[%s5 + $0x9c] sm:$0xff]
    %v287 = vld [vmem:[%s5 + $0xa4] sm:$0xf]
    %v288 = vld [vmem:[%s5 + $0xa8] sm:$0xff]
    %v289 = vld [vmem:[%s5 + $0xb0] sm:$0xf]
    %v290 = vld [vmem:[%s5 + $0xb4] sm:$0xff]
    %v291 = vld [vmem:[%s5 + $0xbc] sm:$0xf]
    %v324 = vunpack.c.l.b16 %v260
    %v325 = vunpack.c.h.b16 %v260
    %v326 = vunpack.c.l.b16 %v261
    %v327 = vunpack.c.l.b16 %v262
    %v328 = vunpack.c.h.b16 %v262
    %v329 = vunpack.c.l.b16 %v263
    %v330 = vunpack.c.l.b16 %v264
    %v331 = vunpack.c.h.b16 %v264
    %v332 = vunpack.c.l.b16 %v265
    %v333 = vunpack.c.l.b16 %v266
    %v334 = vunpack.c.h.b16 %v266
    %v335 = vunpack.c.l.b16 %v267
    %v336 = vunpack.c.l.b16 %v268
    %v337 = vunpack.c.h.b16 %v268
    %v338 = vunpack.c.l.b16 %v269
    %v339 = vunpack.c.l.b16 %v270
    %v340 = vunpack.c.h.b16 %v270
    %v341 = vunpack.c.l.b16 %v271
    %v342 = vunpack.c.l.b16 %v272
    %v343 = vunpack.c.h.b16 %v272
    %v344 = vunpack.c.l.b16 %v273
    %v345 = vunpack.c.l.b16 %v274
    %v346 = vunpack.c.h.b16 %v274
    %v347 = vunpack.c.l.b16 %v275
    %v348 = vunpack.c.l.b16 %v276
    %v349 = vunpack.c.h.b16 %v276
    %v350 = vunpack.c.l.b16 %v277
    %v351 = vunpack.c.l.b16 %v278
    %v352 = vunpack.c.h.b16 %v278
    %v353 = vunpack.c.l.b16 %v279
    %v354 = vunpack.c.l.b16 %v280
    %v355 = vunpack.c.h.b16 %v280
    %v356 = vunpack.c.l.b16 %v281
    %v357 = vunpack.c.l.b16 %v282
    %v358 = vunpack.c.h.b16 %v282
    %v359 = vunpack.c.l.b16 %v283
    %v360 = vunpack.c.l.b16 %v284
    %v361 = vunpack.c.h.b16 %v284
    %v362 = vunpack.c.l.b16 %v285
    %v363 = vunpack.c.l.b16 %v286
    %v364 = vunpack.c.h.b16 %v286
    %v365 = vunpack.c.l.b16 %v287
    %v366 = vunpack.c.l.b16 %v288
    %v367 = vunpack.c.h.b16 %v288
    %v368 = vunpack.c.l.b16 %v289
    %v369 = vunpack.c.l.b16 %v290
    %v370 = vunpack.c.h.b16 %v290
    %v371 = vunpack.c.l.b16 %v291
    %v372 = vpack.c.b16 %v327, %v324
    %v373 = vpack.c.b16 %v328, %v325
    %v374 = vpack.c.b16 %v329, %v326
    %v375 = vpack.c.b16 %v333, %v330
    %v376 = vpack.c.b16 %v334, %v331
    %v377 = vpack.c.b16 %v335, %v332
    %v378 = vpack.c.b16 %v339, %v336
    %v379 = vpack.c.b16 %v340, %v337
    %v380 = vpack.c.b16 %v341, %v338
    %v381 = vpack.c.b16 %v345, %v342
    %v382 = vpack.c.b16 %v346, %v343
    %v383 = vpack.c.b16 %v347, %v344
    %v384 = vpack.c.b16 %v351, %v348
    %v385 = vpack.c.b16 %v352, %v349
    %v386 = vpack.c.b16 %v353, %v350
    %v387 = vpack.c.b16 %v357, %v354
    %v388 = vpack.c.b16 %v358, %v355
    %v389 = vpack.c.b16 %v359, %v356
    %v390 = vpack.c.b16 %v363, %v360
    %v391 = vpack.c.b16 %v364, %v361
    %v392 = vpack.c.b16 %v365, %v362
    %v393 = vpack.c.b16 %v369, %v366
    %v394 = vpack.c.b16 %v370, %v367
    %v395 = vpack.c.b16 %v371, %v368
    %420 = vmatprep.subr.bf16.mxu0 %v394
    %421 = vmatpush1.bf16.msra.mxu0 %v393
    %422 = vmatprep.subr.bf16.mxu0 %v391
    %423 = vmatpush1.bf16.msra.mxu0 %v390
    %424 = vmatprep.subr.bf16.mxu0 %v388
    %425 = vmatpush1.bf16.msra.mxu0 %v387
    %426 = vmatprep.subr.bf16.mxu0 %v385
    %427 = vmatpush1.bf16.msra.mxu0 %v384
    %428 = vmatprep.subr.bf16.mxu0 %v382
    %429 = vmatpush1.bf16.msra.mxu0 %v381
    %430 = vmatprep.subr.bf16.mxu0 %v379
    %431 = vmatpush1.bf16.msra.mxu0 %v378
    %432 = vmatprep.subr.bf16.mxu0 %v376
    %433 = vmatpush1.bf16.msra.mxu0 %v375
    %434 = vmatprep.subr.bf16.mxu0 %v373
    %435 = vmatpush1.bf16.msra.mxu0 %v372
    %436 = vmatprep.subr.bf16.mxu0 0
    %437 = vmatpush2.bf16.msra.mxu0 0
    %438 = vmatprep.subr.bf16.mxu0 0
    %439 = vmatpush2.bf16.msra.mxu0 0
    %440 = vmatprep.subr.bf16.mxu0 0
    %441 = vmatpush2.bf16.msra.mxu0 0
    %442 = vmatprep.subr.bf16.mxu0 0
    %443 = vmatpush2.bf16.msra.mxu0 0
    %444 = vmatprep.subr.bf16.mxu0 0
    %445 = vmatpush2.bf16.msra.mxu0 0
    %446 = vmatprep.subr.bf16.mxu0 0
    %447 = vmatpush2.bf16.msra.mxu0 0
    %448 = vmatprep.subr.bf16.mxu0 0
    %449 = vmatpush2.bf16.msra.mxu0 0
    %450 = vmatprep.subr.bf16.mxu0 0
    %451 = vmatpush2.bf16.msra.mxu0 0
    %452 = vmatprep.mubr.bf16.mxu0 0
    %453 = vmatmul.mubr.bf16.gmra.mxu0 %v258
    %v454 = vpop.f32.mrf.mxu0
    %v455 = vadd.f32 0.0, %v454
    %v456 = vpop.f32.mrf.mxu0
    %v457 = vadd.f32 0.0, %v456
    %v458 = vpop.f32.mrf.mxu0
    %v459 = vadd.f32 0.0, %v458
    %v460 = vpop.f32.mrf.mxu0
    %v461 = vadd.f32 0.0, %v460
    %462 = vmatprep.mubr.bf16.mxu0 0
    %463 = vmatmul.mubr.bf16.gmra.mxu0 %v259
    %v464 = vpop.f32.mrf.mxu0
    %v465 = vadd.f32 0.0, %v464
    %v466 = vpop.f32.mrf.mxu0
    %v467 = vadd.f32 0.0, %v466
    %v468 = vpop.f32.mrf.mxu0
    %v469 = vadd.f32 0.0, %v468
    %v470 = vpop.f32.mrf.mxu0
    %v471 = vadd.f32 0.0, %v470
    %472 = vdwg.mxu0
    %473 = vmatprep.subr.bf16.mxu0 0
    %474 = vmatpush1.bf16.msra.mxu0 %v395
    %475 = vmatprep.subr.bf16.mxu0 0
    %476 = vmatpush1.bf16.msra.mxu0 %v392
    %477 = vmatprep.subr.bf16.mxu0 0
    %478 = vmatpush1.bf16.msra.mxu0 %v389
    %479 = vmatprep.subr.bf16.mxu0 0
    %480 = vmatpush1.bf16.msra.mxu0 %v386
    %481 = vmatprep.subr.bf16.mxu0 0
    %482 = vmatpush1.bf16.msra.mxu0 %v383
    %483 = vmatprep.subr.bf16.mxu0 0
    %484 = vmatpush1.bf16.msra.mxu0 %v380
    %485 = vmatprep.subr.bf16.mxu0 0
    %486 = vmatpush1.bf16.msra.mxu0 %v377
    %487 = vmatprep.subr.bf16.mxu0 0
    %488 = vmatpush1.bf16.msra.mxu0 %v374
    %489 = vmatprep.subr.bf16.mxu0 0
    %490 = vmatpush2.bf16.msra.mxu0 0
    %491 = vmatprep.subr.bf16.mxu0 0
    %492 = vmatpush2.bf16.msra.mxu0 0
    %493 = vmatprep.subr.bf16.mxu0 0
    %494 = vmatpush2.bf16.msra.mxu0 0
    %495 = vmatprep.subr.bf16.mxu0 0
    %496 = vmatpush2.bf16.msra.mxu0 0
    %497 = vmatprep.subr.bf16.mxu0 0
    %498 = vmatpush2.bf16.msra.mxu0 0
    %499 = vmatprep.subr.bf16.mxu0 0
    %500 = vmatpush2.bf16.msra.mxu0 0
    %501 = vmatprep.subr.bf16.mxu0 0
    %502 = vmatpush2.bf16.msra.mxu0 0
    %503 = vmatprep.subr.bf16.mxu0 0
    %504 = vmatpush2.bf16.msra.mxu0 0
    %505 = vmatprep.mubr.bf16.mxu0 0
    %506 = vmatmul.mubr.bf16.gmra.mxu0 %v258
    %v507 = vpop.f32.mrf.mxu0
    %v508 = vadd.f32 0.0, %v507
    %v509 = vpop.f32.mrf.mxu0
    %v510 = vpop.f32.mrf.mxu0
    %v511 = vadd.f32 0.0, %v510
    %v512 = vpop.f32.mrf.mxu0
    %513 = vmatprep.mubr.bf16.mxu0 0
    %514 = vmatmul.mubr.bf16.gmra.mxu0 %v259
    %v515 = vpop.f32.mrf.mxu0
    %v516 = vadd.f32 0.0, %v515
    %v517 = vpop.f32.mrf.mxu0
    %v518 = vpop.f32.mrf.mxu0
    %v519 = vadd.f32 0.0, %v518
    %v520 = vpop.f32.mrf.mxu0
    %521 = vdwg.mxu0
    %v522 = vpack.c.bf16 %v459, %v455
    %v523 = vpack.c.bf16 %v469, %v465
    %v524 = vpack.c.bf16 %v461, %v457
    %v525 = vpack.c.bf16 %v471, %v467
    %v526 = vpack.c.bf16 %v511, %v508
    %v527 = vpack.c.bf16 %v519, %v516
    %vm528 = vcmask 261120
    %v530 = vsel %vm528, %v522, 0
    %v533 = vsel %vm528, %v524, 0
    %535 = vmatprep.subr.bf16.mxu0 0
    %536 = vmatpush1.bf16.xpose.msra.mxu0 0
    %537 = vmatprep.subr.bf16.mxu0 0
    %538 = vmatpush1.bf16.xpose.msra.mxu0 0
    %539 = vmatprep.subr.bf16.mxu0 0
    %540 = vmatpush1.bf16.xpose.msra.mxu0 0
    %541 = vmatprep.subr.bf16.mxu0 0
    %542 = vmatpush1.bf16.xpose.msra.mxu0 0
    %543 = vmatprep.subr.bf16.mxu0 0
    %544 = vmatpush1.bf16.xpose.msra.mxu0 0
    %545 = vmatprep.subr.bf16.mxu0 0
    %546 = vmatpush1.bf16.xpose.msra.mxu0 0
    %547 = vmatprep.subr.bf16.mxu0 0
    %548 = vmatpush1.bf16.xpose.msra.mxu0 0
    %549 = vmatprep.subr.bf16.mxu0 0
    %550 = vmatpush1.bf16.xpose.msra.mxu0 %v533
    %551 = vmatprep.subr.bf16.mxu0 0
    %552 = vmatpush2.bf16.xpose.msra.mxu0 0
    %553 = vmatprep.subr.bf16.mxu0 0
    %554 = vmatpush2.bf16.xpose.msra.mxu0 0
    %555 = vmatprep.subr.bf16.mxu0 0
    %556 = vmatpush2.bf16.xpose.msra.mxu0 0
    %557 = vmatprep.subr.bf16.mxu0 0
    %558 = vmatpush2.bf16.xpose.msra.mxu0 0
    %559 = vmatprep.subr.bf16.mxu0 0
    %560 = vmatpush2.bf16.xpose.msra.mxu0 0
    %561 = vmatprep.subr.bf16.mxu0 0
    %562 = vmatpush2.bf16.xpose.msra.mxu0 0
    %563 = vmatprep.subr.bf16.mxu0 0
    %564 = vmatpush2.bf16.xpose.msra.mxu0 0
    %565 = vmatprep.subr.bf16.mxu0 0
    %566 = vmatpush2.bf16.xpose.msra.mxu0 0
    %567 = vmatprep.mubr.bf16.mxu0 0
    %568 = vmatmul.mubr.bf16.gmra.mxu0 %v530
    %v569 = vpop.f32.mrf.mxu0
    %v570 = vadd.f32 0.0, %v569
    %v571 = vpop.f32.mrf.mxu0
    %v572 = vpop.f32.mrf.mxu0
    %v573 = vadd.f32 0.0, %v572
    %v574 = vpop.f32.mrf.mxu0
    %575 = vdwg.mxu0
    %v577 = vsel %vm528, %v523, 0
    %v580 = vsel %vm528, %v525, 0
    %582 = vmatprep.subr.bf16.mxu0 0
    %583 = vmatpush1.bf16.xpose.msra.mxu0 0
    %584 = vmatprep.subr.bf16.mxu0 0
    %585 = vmatpush1.bf16.xpose.msra.mxu0 0
    %586 = vmatprep.subr.bf16.mxu0 0
    %587 = vmatpush1.bf16.xpose.msra.mxu0 0
    %588 = vmatprep.subr.bf16.mxu0 0
    %589 = vmatpush1.bf16.xpose.msra.mxu0 0
    %590 = vmatprep.subr.bf16.mxu0 0
    %591 = vmatpush1.bf16.xpose.msra.mxu0 0
    %592 = vmatprep.subr.bf16.mxu0 0
    %593 = vmatpush1.bf16.xpose.msra.mxu0 0
    %594 = vmatprep.subr.bf16.mxu0 0
    %595 = vmatpush1.bf16.xpose.msra.mxu0 0
    %596 = vmatprep.subr.bf16.mxu0 0
    %597 = vmatpush1.bf16.xpose.msra.mxu0 %v580
    %598 = vmatprep.subr.bf16.mxu0 0
    %599 = vmatpush2.bf16.xpose.msra.mxu0 0
    %600 = vmatprep.subr.bf16.mxu0 0
    %601 = vmatpush2.bf16.xpose.msra.mxu0 0
    %602 = vmatprep.subr.bf16.mxu0 0
    %603 = vmatpush2.bf16.xpose.msra.mxu0 0
    %604 = vmatprep.subr.bf16.mxu0 0
    %605 = vmatpush2.bf16.xpose.msra.mxu0 0
    %606 = vmatprep.subr.bf16.mxu0 0
    %607 = vmatpush2.bf16.xpose.msra.mxu0 0
    %608 = vmatprep.subr.bf16.mxu0 0
    %609 = vmatpush2.bf16.xpose.msra.mxu0 0
    %610 = vmatprep.subr.bf16.mxu0 0
    %611 = vmatpush2.bf16.xpose.msra.mxu0 0
    %612 = vmatprep.subr.bf16.mxu0 0
    %613 = vmatpush2.bf16.xpose.msra.mxu0 0
    %614 = vmatprep.mubr.bf16.mxu0 0
    %615 = vmatmul.mubr.bf16.gmra.mxu0 %v577
    %v616 = vpop.f32.mrf.mxu0
    %v617 = vadd.f32 0.0, %v616
    %v618 = vpop.f32.mrf.mxu0
    %v619 = vpop.f32.mrf.mxu0
    %v620 = vadd.f32 0.0, %v619
    %v621 = vpop.f32.mrf.mxu0
    %622 = vdwg.mxu0
    %vm623 = vcmask 130048
    %v624 = vsel %vm623, %v570, -inf
    %625 = vmax.xlane.f32.xlu0 %v624
    %v626 = vpop.xlane.xlu0 %625
    %v627 = vsel %vm623, %v573, -inf
    %628 = vmax.xlane.f32.xlu0 %v627
    %v629 = vpop.xlane.xlu0 %628
    %v630 = vsel %vm623, %v617, -inf
    %631 = vmax.xlane.f32.xlu0 %v630
    %v632 = vpop.xlane.xlu0 %631
    %v633 = vsel %vm623, %v620, -inf
    %634 = vmax.xlane.f32.xlu0 %v633
    %v635 = vpop.xlane.xlu0 %634
    %v636 = vsub.f32 %v570, %v626
    %v637 = vsub.f32 %v573, %v629
    %v638 = vsub.f32 %v617, %v632
    %v639 = vsub.f32 %v620, %v635
    %v640 = vmul.f32 %v636, 1.442695
    %v641 = vpow.pop %v640
    %v642 = vmul.f32 %v637, 1.442695
    %v643 = vpow.pop %v642
    %v644 = vmul.f32 %v638, 1.442695
    %v645 = vpow.pop %v644
    %v646 = vmul.f32 %v639, 1.442695
    %v647 = vpow.pop %v646
    %v648 = vsel %vm623, %v641, 0.0
    %649 = vadd.xlane.f32.xlu0 %v648
    %v650 = vpop.xlane.xlu0 %649
    %v651 = vsel %vm623, %v643, 0.0
    %652 = vadd.xlane.f32.xlu0 %v651
    %v653 = vpop.xlane.xlu0 %652
    %v654 = vsel %vm623, %v645, 0.0
    %655 = vadd.xlane.f32.xlu0 %v654
    %v656 = vpop.xlane.xlu0 %655
    %v657 = vsel %vm623, %v647, 0.0
    %658 = vadd.xlane.f32.xlu0 %v657
    %v659 = vpop.xlane.xlu0 %658
    %v660 = vrcp.pop %v650
    %v661 = vrcp.pop %v653
    %v662 = vrcp.pop %v656
    %v663 = vrcp.pop %v659
    %v664 = vmul.f32 %v641, %v660
    %v665 = vmul.f32 %v643, %v661
    %v666 = vmul.f32 %v645, %v662
    %v667 = vmul.f32 %v647, %v663
    %v668 = vpack.c.bf16 %v665, %v664
    %v669 = vpack.c.bf16 %v667, %v666
    %v671 = vsel %vm623, %v668, 0
    %673 = vmatprep.subr.bf16.mxu0 0
    %674 = vmatpush1.bf16.msra.mxu0 0
    %675 = vmatprep.subr.bf16.mxu0 0
    %676 = vmatpush1.bf16.msra.mxu0 0
    %677 = vmatprep.subr.bf16.mxu0 0
    %678 = vmatpush1.bf16.msra.mxu0 0
    %679 = vmatprep.subr.bf16.mxu0 0
    %680 = vmatpush1.bf16.msra.mxu0 0
    %681 = vmatprep.subr.bf16.mxu0 0
    %682 = vmatpush1.bf16.msra.mxu0 0
    %683 = vmatprep.subr.bf16.mxu0 0
    %684 = vmatpush1.bf16.msra.mxu0 0
    %685 = vmatprep.subr.bf16.mxu0 0
    %686 = vmatpush1.bf16.msra.mxu0 0
    %687 = vmatprep.subr.bf16.mxu0 0
    %688 = vmatpush1.bf16.msra.mxu0 %v526
    %689 = vmatprep.subr.bf16.mxu0 0
    %690 = vmatpush2.bf16.msra.mxu0 0
    %691 = vmatprep.subr.bf16.mxu0 0
    %692 = vmatpush2.bf16.msra.mxu0 0
    %693 = vmatprep.subr.bf16.mxu0 0
    %694 = vmatpush2.bf16.msra.mxu0 0
    %695 = vmatprep.subr.bf16.mxu0 0
    %696 = vmatpush2.bf16.msra.mxu0 0
    %697 = vmatprep.subr.bf16.mxu0 0
    %698 = vmatpush2.bf16.msra.mxu0 0
    %699 = vmatprep.subr.bf16.mxu0 0
    %700 = vmatpush2.bf16.msra.mxu0 0
    %701 = vmatprep.subr.bf16.mxu0 0
    %702 = vmatpush2.bf16.msra.mxu0 0
    %703 = vmatprep.subr.bf16.mxu0 0
    %704 = vmatpush2.bf16.msra.mxu0 0
    %705 = vmatprep.mubr.bf16.mxu0 0
    %706 = vmatmul.mubr.bf16.gmra.mxu0 %v671
    %v707 = vpop.f32.mrf.mxu0
    %v708 = vadd.f32 0.0, %v707
    %v709 = vpop.f32.mrf.mxu0
    %v710 = vpop.f32.mrf.mxu0
    %v711 = vadd.f32 0.0, %v710
    %v712 = vpop.f32.mrf.mxu0
    %713 = vdwg.mxu0
    %v715 = vsel %vm623, %v669, 0
    %717 = vmatprep.subr.bf16.mxu0 0
    %718 = vmatpush1.bf16.msra.mxu0 0
    %719 = vmatprep.subr.bf16.mxu0 0
    %720 = vmatpush1.bf16.msra.mxu0 0
    %721 = vmatprep.subr.bf16.mxu0 0
    %722 = vmatpush1.bf16.msra.mxu0 0
    %723 = vmatprep.subr.bf16.mxu0 0
    %724 = vmatpush1.bf16.msra.mxu0 0
    %725 = vmatprep.subr.bf16.mxu0 0
    %726 = vmatpush1.bf16.msra.mxu0 0
    %727 = vmatprep.subr.bf16.mxu0 0
    %728 = vmatpush1.bf16.msra.mxu0 0
    %729 = vmatprep.subr.bf16.mxu0 0
    %730 = vmatpush1.bf16.msra.mxu0 0
    %731 = vmatprep.subr.bf16.mxu0 0
    %732 = vmatpush1.bf16.msra.mxu0 %v527
    %733 = vmatprep.subr.bf16.mxu0 0
    %734 = vmatpush2.bf16.msra.mxu0 0
    %735 = vmatprep.subr.bf16.mxu0 0
    %736 = vmatpush2.bf16.msra.mxu0 0
    %737 = vmatprep.subr.bf16.mxu0 0
    %738 = vmatpush2.bf16.msra.mxu0 0
    %739 = vmatprep.subr.bf16.mxu0 0
    %740 = vmatpush2.bf16.msra.mxu0 0
    %741 = vmatprep.subr.bf16.mxu0 0
    %742 = vmatpush2.bf16.msra.mxu0 0
    %743 = vmatprep.subr.bf16.mxu0 0
    %744 = vmatpush2.bf16.msra.mxu0 0
    %745 = vmatprep.subr.bf16.mxu0 0
    %746 = vmatpush2.bf16.msra.mxu0 0
    %747 = vmatprep.subr.bf16.mxu0 0
    %748 = vmatpush2.bf16.msra.mxu0 0
    %749 = vmatprep.mubr.bf16.mxu0 0
    %750 = vmatmul.mubr.bf16.gmra.mxu0 %v715
    %v751 = vpop.f32.mrf.mxu0
    %v752 = vadd.f32 0.0, %v751
    %v753 = vpop.f32.mrf.mxu0
    %v754 = vpop.f32.mrf.mxu0
    %v755 = vadd.f32 0.0, %v754
    %v756 = vpop.f32.mrf.mxu0
    %757 = vdwg.mxu0
    %v758 = vpack.c.bf16 %v711, %v708
    %v759 = vpack.c.bf16 %v755, %v752
    %761 = vrot.lane.b32.xlu0 %v522, 96
    %v762 = vpop.permute.xlu0 %761
    %764 = vrot.lane.b32.xlu0 %v524, 96
    %v765 = vpop.permute.xlu0 %764
    %v767 = vsel %vm528, %v762, 0
    %v770 = vsel %vm528, %v765, 0
    %772 = vmatprep.subr.bf16.mxu0 0
    %773 = vmatpush1.bf16.xpose.msra.mxu0 0
    %774 = vmatprep.subr.bf16.mxu0 0
    %775 = vmatpush1.bf16.xpose.msra.mxu0 0
    %776 = vmatprep.subr.bf16.mxu0 0
    %777 = vmatpush1.bf16.xpose.msra.mxu0 0
    %778 = vmatprep.subr.bf16.mxu0 0
    %779 = vmatpush1.bf16.xpose.msra.mxu0 0
    %780 = vmatprep.subr.bf16.mxu0 0
    %781 = vmatpush1.bf16.xpose.msra.mxu0 0
    %782 = vmatprep.subr.bf16.mxu0 0
    %783 = vmatpush1.bf16.xpose.msra.mxu0 0
    %784 = vmatprep.subr.bf16.mxu0 0
    %785 = vmatpush1.bf16.xpose.msra.mxu0 0
    %786 = vmatprep.subr.bf16.mxu0 0
    %787 = vmatpush1.bf16.xpose.msra.mxu0 %v770
    %788 = vmatprep.subr.bf16.mxu0 0
    %789 = vmatpush2.bf16.xpose.msra.mxu0 0
    %790 = vmatprep.subr.bf16.mxu0 0
    %791 = vmatpush2.bf16.xpose.msra.mxu0 0
    %792 = vmatprep.subr.bf16.mxu0 0
    %793 = vmatpush2.bf16.xpose.msra.mxu0 0
    %794 = vmatprep.subr.bf16.mxu0 0
    %795 = vmatpush2.bf16.xpose.msra.mxu0 0
    %796 = vmatprep.subr.bf16.mxu0 0
    %797 = vmatpush2.bf16.xpose.msra.mxu0 0
    %798 = vmatprep.subr.bf16.mxu0 0
    %799 = vmatpush2.bf16.xpose.msra.mxu0 0
    %800 = vmatprep.subr.bf16.mxu0 0
    %801 = vmatpush2.bf16.xpose.msra.mxu0 0
    %802 = vmatprep.subr.bf16.mxu0 0
    %803 = vmatpush2.bf16.xpose.msra.mxu0 0
    %804 = vmatprep.mubr.bf16.mxu0 0
    %805 = vmatmul.mubr.bf16.gmra.mxu0 %v767
    %v806 = vpop.f32.mrf.mxu0
    %v807 = vadd.f32 0.0, %v806
    %v808 = vpop.f32.mrf.mxu0
    %v809 = vpop.f32.mrf.mxu0
    %v810 = vadd.f32 0.0, %v809
    %v811 = vpop.f32.mrf.mxu0
    %812 = vdwg.mxu0
    %814 = vrot.lane.b32.xlu0 %v523, 96
    %v815 = vpop.permute.xlu0 %814
    %817 = vrot.lane.b32.xlu0 %v525, 96
    %v818 = vpop.permute.xlu0 %817
    %v820 = vsel %vm528, %v815, 0
    %v823 = vsel %vm528, %v818, 0
    %825 = vmatprep.subr.bf16.mxu0 0
    %826 = vmatpush1.bf16.xpose.msra.mxu0 0
    %827 = vmatprep.subr.bf16.mxu0 0
    %828 = vmatpush1.bf16.xpose.msra.mxu0 0
    %829 = vmatprep.subr.bf16.mxu0 0
    %830 = vmatpush1.bf16.xpose.msra.mxu0 0
    %831 = vmatprep.subr.bf16.mxu0 0
    %832 = vmatpush1.bf16.xpose.msra.mxu0 0
    %833 = vmatprep.subr.bf16.mxu0 0
    %834 = vmatpush1.bf16.xpose.msra.mxu0 0
    %835 = vmatprep.subr.bf16.mxu0 0
    %836 = vmatpush1.bf16.xpose.msra.mxu0 0
    %837 = vmatprep.subr.bf16.mxu0 0
    %838 = vmatpush1.bf16.xpose.msra.mxu0 0
    %839 = vmatprep.subr.bf16.mxu0 0
    %840 = vmatpush1.bf16.xpose.msra.mxu0 %v823
    %841 = vmatprep.subr.bf16.mxu0 0
    %842 = vmatpush2.bf16.xpose.msra.mxu0 0
    %843 = vmatprep.subr.bf16.mxu0 0
    %844 = vmatpush2.bf16.xpose.msra.mxu0 0
    %845 = vmatprep.subr.bf16.mxu0 0
    %846 = vmatpush2.bf16.xpose.msra.mxu0 0
    %847 = vmatprep.subr.bf16.mxu0 0
    %848 = vmatpush2.bf16.xpose.msra.mxu0 0
    %849 = vmatprep.subr.bf16.mxu0 0
    %850 = vmatpush2.bf16.xpose.msra.mxu0 0
    %851 = vmatprep.subr.bf16.mxu0 0
    %852 = vmatpush2.bf16.xpose.msra.mxu0 0
    %853 = vmatprep.subr.bf16.mxu0 0
    %854 = vmatpush2.bf16.xpose.msra.mxu0 0
    %855 = vmatprep.subr.bf16.mxu0 0
    %856 = vmatpush2.bf16.xpose.msra.mxu0 0
    %857 = vmatprep.mubr.bf16.mxu0 0
    %858 = vmatmul.mubr.bf16.gmra.mxu0 %v820
    %v859 = vpop.f32.mrf.mxu0
    %v860 = vadd.f32 0.0, %v859
    %v861 = vpop.f32.mrf.mxu0
    %v862 = vpop.f32.mrf.mxu0
    %v863 = vadd.f32 0.0, %v862
    %v864 = vpop.f32.mrf.mxu0
    %865 = vdwg.mxu0
    %v866 = vsel %vm623, %v807, -inf
    %867 = vmax.xlane.f32.xlu0 %v866
    %v868 = vpop.xlane.xlu0 %867
    %v869 = vsel %vm623, %v810, -inf
    %870 = vmax.xlane.f32.xlu0 %v869
    %v871 = vpop.xlane.xlu0 %870
    %v872 = vsel %vm623, %v860, -inf
    %873 = vmax.xlane.f32.xlu0 %v872
    %v874 = vpop.xlane.xlu0 %873
    %v875 = vsel %vm623, %v863, -inf
    %876 = vmax.xlane.f32.xlu0 %v875
    %v877 = vpop.xlane.xlu0 %876
    %v878 = vsub.f32 %v807, %v868
    %v879 = vsub.f32 %v810, %v871
    %v880 = vsub.f32 %v860, %v874
    %v881 = vsub.f32 %v863, %v877
    %v882 = vmul.f32 %v878, 1.442695
    %v883 = vpow.pop %v882
    %v884 = vmul.f32 %v879, 1.442695
    %v885 = vpow.pop %v884
    %v886 = vmul.f32 %v880, 1.442695
    %v887 = vpow.pop %v886
    %v888 = vmul.f32 %v881, 1.442695
    %v889 = vpow.pop %v888
    %v890 = vsel %vm623, %v883, 0.0
    %891 = vadd.xlane.f32.xlu0 %v890
    %v892 = vpop.xlane.xlu0 %891
    %v893 = vsel %vm623, %v885, 0.0
    %894 = vadd.xlane.f32.xlu0 %v893
    %v895 = vpop.xlane.xlu0 %894
    %v896 = vsel %vm623, %v887, 0.0
    %897 = vadd.xlane.f32.xlu0 %v896
    %v898 = vpop.xlane.xlu0 %897
    %v899 = vsel %vm623, %v889, 0.0
    %900 = vadd.xlane.f32.xlu0 %v899
    %v901 = vpop.xlane.xlu0 %900
    %v902 = vrcp.pop %v892
    %v903 = vrcp.pop %v895
    %v904 = vrcp.pop %v898
    %v905 = vrcp.pop %v901
    %v906 = vmul.f32 %v883, %v902
    %v907 = vmul.f32 %v885, %v903
    %v908 = vmul.f32 %v887, %v904
    %v909 = vmul.f32 %v889, %v905
    %v910 = vpack.c.bf16 %v907, %v906
    %v911 = vpack.c.bf16 %v909, %v908
    %913 = vrot.lane.b32.xlu0 %v526, 96
    %v914 = vpop.permute.xlu0 %913
    %v917 = vsel %vm623, %v910, 0
    %919 = vmatprep.subr.bf16.mxu0 0
    %920 = vmatpush1.bf16.msra.mxu0 0
    %921 = vmatprep.subr.bf16.mxu0 0
    %922 = vmatpush1.bf16.msra.mxu0 0
    %923 = vmatprep.subr.bf16.mxu0 0
    %924 = vmatpush1.bf16.msra.mxu0 0
    %925 = vmatprep.subr.bf16.mxu0 0
    %926 = vmatpush1.bf16.msra.mxu0 0
    %927 = vmatprep.subr.bf16.mxu0 0
    %928 = vmatpush1.bf16.msra.mxu0 0
    %929 = vmatprep.subr.bf16.mxu0 0
    %930 = vmatpush1.bf16.msra.mxu0 0
    %931 = vmatprep.subr.bf16.mxu0 0
    %932 = vmatpush1.bf16.msra.mxu0 0
    %933 = vmatprep.subr.bf16.mxu0 0
    %934 = vmatpush1.bf16.msra.mxu0 %v914
    %935 = vmatprep.subr.bf16.mxu0 0
    %936 = vmatpush2.bf16.msra.mxu0 0
    %937 = vmatprep.subr.bf16.mxu0 0
    %938 = vmatpush2.bf16.msra.mxu0 0
    %939 = vmatprep.subr.bf16.mxu0 0
    %940 = vmatpush2.bf16.msra.mxu0 0
    %941 = vmatprep.subr.bf16.mxu0 0
    %942 = vmatpush2.bf16.msra.mxu0 0
    %943 = vmatprep.subr.bf16.mxu0 0
    %944 = vmatpush2.bf16.msra.mxu0 0
    %945 = vmatprep.subr.bf16.mxu0 0
    %946 = vmatpush2.bf16.msra.mxu0 0
    %947 = vmatprep.subr.bf16.mxu0 0
    %948 = vmatpush2.bf16.msra.mxu0 0
    %949 = vmatprep.subr.bf16.mxu0 0
    %950 = vmatpush2.bf16.msra.mxu0 0
    %951 = vmatprep.mubr.bf16.mxu0 0
    %952 = vmatmul.mubr.bf16.gmra.mxu0 %v917
    %v953 = vpop.f32.mrf.mxu0
    %v954 = vadd.f32 0.0, %v953
    %v955 = vpop.f32.mrf.mxu0
    %v956 = vpop.f32.mrf.mxu0
    %v957 = vadd.f32 0.0, %v956
    %v958 = vpop.f32.mrf.mxu0
    %959 = vdwg.mxu0
    %961 = vrot.lane.b32.xlu0 %v527, 96
    %v962 = vpop.permute.xlu0 %961
    %v965 = vsel %vm623, %v911, 0
    %967 = vmatprep.subr.bf16.mxu0 0
    %968 = vmatpush1.bf16.msra.mxu0 0
    %969 = vmatprep.subr.bf16.mxu0 0
    %970 = vmatpush1.bf16.msra.mxu0 0
    %971 = vmatprep.subr.bf16.mxu0 0
    %972 = vmatpush1.bf16.msra.mxu0 0
    %973 = vmatprep.subr.bf16.mxu0 0
    %974 = vmatpush1.bf16.msra.mxu0 0
    %975 = vmatprep.subr.bf16.mxu0 0
    %976 = vmatpush1.bf16.msra.mxu0 0
    %977 = vmatprep.subr.bf16.mxu0 0
    %978 = vmatpush1.bf16.msra.mxu0 0
    %979 = vmatprep.subr.bf16.mxu0 0
    %980 = vmatpush1.bf16.msra.mxu0 0
    %981 = vmatprep.subr.bf16.mxu0 0
    %982 = vmatpush1.bf16.msra.mxu0 %v962
    %983 = vmatprep.subr.bf16.mxu0 0
    %984 = vmatpush2.bf16.msra.mxu0 0
    %985 = vmatprep.subr.bf16.mxu0 0
    %986 = vmatpush2.bf16.msra.mxu0 0
    %987 = vmatprep.subr.bf16.mxu0 0
    %988 = vmatpush2.bf16.msra.mxu0 0
    %989 = vmatprep.subr.bf16.mxu0 0
    %990 = vmatpush2.bf16.msra.mxu0 0
    %991 = vmatprep.subr.bf16.mxu0 0
    %992 = vmatpush2.bf16.msra.mxu0 0
    %993 = vmatprep.subr.bf16.mxu0 0
    %994 = vmatpush2.bf16.msra.mxu0 0
    %995 = vmatprep.subr.bf16.mxu0 0
    %996 = vmatpush2.bf16.msra.mxu0 0
    %997 = vmatprep.subr.bf16.mxu0 0
    %998 = vmatpush2.bf16.msra.mxu0 0
    %999 = vmatprep.mubr.bf16.mxu0 0
    %1000 = vmatmul.mubr.bf16.gmra.mxu0 %v965
    %v1001 = vpop.f32.mrf.mxu0
    %v1002 = vadd.f32 0.0, %v1001
    %v1003 = vpop.f32.mrf.mxu0
    %v1004 = vpop.f32.mrf.mxu0
    %v1005 = vadd.f32 0.0, %v1004
    %v1006 = vpop.f32.mrf.mxu0
    %1007 = vdwg.mxu0
    %v1008 = vpack.c.bf16 %v957, %v954
    %v1009 = vpack.c.bf16 %v1005, %v1002
    %1010 = vrot.lane.b32.xlu0 %v522, 64
    %v1011 = vpop.permute.xlu0 %1010
    %1012 = vrot.lane.b32.xlu0 %v524, 64
    %v1013 = vpop.permute.xlu0 %1012
    %v1015 = vsel %vm528, %v1011, 0
    %v1018 = vsel %vm528, %v1013, 0
    %1020 = vmatprep.subr.bf16.mxu0 0
    %1021 = vmatpush1.bf16.xpose.msra.mxu0 0
    %1022 = vmatprep.subr.bf16.mxu0 0
    %1023 = vmatpush1.bf16.xpose.msra.mxu0 0
    %1024 = vmatprep.subr.bf16.mxu0 0
    %1025 = vmatpush1.bf16.xpose.msra.mxu0 0
    %1026 = vmatprep.subr.bf16.mxu0 0
    %1027 = vmatpush1.bf16.xpose.msra.mxu0 0
    %1028 = vmatprep.subr.bf16.mxu0 0
    %1029 = vmatpush1.bf16.xpose.msra.mxu0 0
    %1030 = vmatprep.subr.bf16.mxu0 0
    %1031 = vmatpush1.bf16.xpose.msra.mxu0 0
    %1032 = vmatprep.subr.bf16.mxu0 0
    %1033 = vmatpush1.bf16.xpose.msra.mxu0 0
    %1034 = vmatprep.subr.bf16.mxu0 0
    %1035 = vmatpush1.bf16.xpose.msra.mxu0 %v1018
    %1036 = vmatprep.subr.bf16.mxu0 0
    %1037 = vmatpush2.bf16.xpose.msra.mxu0 0
    %1038 = vmatprep.subr.bf16.mxu0 0
    %1039 = vmatpush2.bf16.xpose.msra.mxu0 0
    %1040 = vmatprep.subr.bf16.mxu0 0
    %1041 = vmatpush2.bf16.xpose.msra.mxu0 0
    %1042 = vmatprep.subr.bf16.mxu0 0
    %1043 = vmatpush2.bf16.xpose.msra.mxu0 0
    %1044 = vmatprep.subr.bf16.mxu0 0
    %1045 = vmatpush2.bf16.xpose.msra.mxu0 0
    %1046 = vmatprep.subr.bf16.mxu0 0
    %1047 = vmatpush2.bf16.xpose.msra.mxu0 0
    %1048 = vmatprep.subr.bf16.mxu0 0
    %1049 = vmatpush2.bf16.xpose.msra.mxu0 0
    %1050 = vmatprep.subr.bf16.mxu0 0
    %1051 = vmatpush2.bf16.xpose.msra.mxu0 0
    %1052 = vmatprep.mubr.bf16.mxu0 0
    %1053 = vmatmul.mubr.bf16.gmra.mxu0 %v1015
    %v1054 = vpop.f32.mrf.mxu0
    %v1055 = vadd.f32 0.0, %v1054
    %v1056 = vpop.f32.mrf.mxu0
    %v1057 = vpop.f32.mrf.mxu0
    %v1058 = vadd.f32 0.0, %v1057
    %v1059 = vpop.f32.mrf.mxu0
    %1060 = vdwg.mxu0
    %1061 = vrot.lane.b32.xlu0 %v523, 64
    %v1062 = vpop.permute.xlu0 %1061
    %1063 = vrot.lane.b32.xlu0 %v525, 64
    %v1064 = vpop.permute.xlu0 %1063
    %v1066 = vsel %vm528, %v1062, 0
    %v1069 = vsel %vm528, %v1064, 0
    %1071 = vmatprep.subr.bf16.mxu0 0
    %1072 = vmatpush1.bf16.xpose.msra.mxu0 0
    %1073 = vmatprep.subr.bf16.mxu0 0
    %1074 = vmatpush1.bf16.xpose.msra.mxu0 0
    %1075 = vmatprep.subr.bf16.mxu0 0
    %1076 = vmatpush1.bf16.xpose.msra.mxu0 0
    %1077 = vmatprep.subr.bf16.mxu0 0
    %1078 = vmatpush1.bf16.xpose.msra.mxu0 0
    %1079 = vmatprep.subr.bf16.mxu0 0
    %1080 = vmatpush1.bf16.xpose.msra.mxu0 0
    %1081 = vmatprep.subr.bf16.mxu0 0
    %1082 = vmatpush1.bf16.xpose.msra.mxu0 0
    %1083 = vmatprep.subr.bf16.mxu0 0
    %1084 = vmatpush1.bf16.xpose.msra.mxu0 0
    %1085 = vmatprep.subr.bf16.mxu0 0
    %1086 = vmatpush1.bf16.xpose.msra.mxu0 %v1069
    %1087 = vmatprep.subr.bf16.mxu0 0
    %1088 = vmatpush2.bf16.xpose.msra.mxu0 0
    %1089 = vmatprep.subr.bf16.mxu0 0
    %1090 = vmatpush2.bf16.xpose.msra.mxu0 0
    %1091 = vmatprep.subr.bf16.mxu0 0
    %1092 = vmatpush2.bf16.xpose.msra.mxu0 0
    %1093 = vmatprep.subr.bf16.mxu0 0
    %1094 = vmatpush2.bf16.xpose.msra.mxu0 0
    %1095 = vmatprep.subr.bf16.mxu0 0
    %1096 = vmatpush2.bf16.xpose.msra.mxu0 0
    %1097 = vmatprep.subr.bf16.mxu0 0
    %1098 = vmatpush2.bf16.xpose.msra.mxu0 0
    %1099 = vmatprep.subr.bf16.mxu0 0
    %1100 = vmatpush2.bf16.xpose.msra.mxu0 0
    %1101 = vmatprep.subr.bf16.mxu0 0
    %1102 = vmatpush2.bf16.xpose.msra.mxu0 0
    %1103 = vmatprep.mubr.bf16.mxu0 0
    %1104 = vmatmul.mubr.bf16.gmra.mxu0 %v1066
    %v1105 = vpop.f32.mrf.mxu0
    %v1106 = vadd.f32 0.0, %v1105
    %v1107 = vpop.f32.mrf.mxu0
    %v1108 = vpop.f32.mrf.mxu0
    %v1109 = vadd.f32 0.0, %v1108
    %v1110 = vpop.f32.mrf.mxu0
    %1111 = vdwg.mxu0
    %v1112 = vsel %vm623, %v1055, -inf
    %1113 = vmax.xlane.f32.xlu0 %v1112
    %v1114 = vpop.xlane.xlu0 %1113
    %v1115 = vsel %vm623, %v1058, -inf
    %1116 = vmax.xlane.f32.xlu0 %v1115
    %v1117 = vpop.xlane.xlu0 %1116
    %v1118 = vsel %vm623, %v1106, -inf
    %1119 = vmax.xlane.f32.xlu0 %v1118
    %v1120 = vpop.xlane.xlu0 %1119
    %v1121 = vsel %vm623, %v1109, -inf
    %1122 = vmax.xlane.f32.xlu0 %v1121
    %v1123 = vpop.xlane.xlu0 %1122
    %v1124 = vsub.f32 %v1055, %v1114
    %v1125 = vsub.f32 %v1058, %v1117
    %v1126 = vsub.f32 %v1106, %v1120
    %v1127 = vsub.f32 %v1109, %v1123
    %v1128 = vmul.f32 %v1124, 1.442695
    %v1129 = vpow.pop %v1128
    %v1130 = vmul.f32 %v1125, 1.442695
    %v1131 = vpow.pop %v1130
    %v1132 = vmul.f32 %v1126, 1.442695
    %v1133 = vpow.pop %v1132
    %v1134 = vmul.f32 %v1127, 1.442695
    %v1135 = vpow.pop %v1134
    %v1136 = vsel %vm623, %v1129, 0.0
    %1137 = vadd.xlane.f32.xlu0 %v1136
    %v1138 = vpop.xlane.xlu0 %1137
    %v1139 = vsel %vm623, %v1131, 0.0
    %1140 = vadd.xlane.f32.xlu0 %v1139
    %v1141 = vpop.xlane.xlu0 %1140
    %v1142 = vsel %vm623, %v1133, 0.0
    %1143 = vadd.xlane.f32.xlu0 %v1142
    %v1144 = vpop.xlane.xlu0 %1143
    %v1145 = vsel %vm623, %v1135, 0.0
    %1146 = vadd.xlane.f32.xlu0 %v1145
    %v1147 = vpop.xlane.xlu0 %1146
    %v1148 = vrcp.pop %v1138
    %v1149 = vrcp.pop %v1141
    %v1150 = vrcp.pop %v1144
    %v1151 = vrcp.pop %v1147
    %v1152 = vmul.f32 %v1129, %v1148
    %v1153 = vmul.f32 %v1131, %v1149
    %v1154 = vmul.f32 %v1133, %v1150
    %v1155 = vmul.f32 %v1135, %v1151
    %v1156 = vpack.c.bf16 %v1153, %v1152
    %v1157 = vpack.c.bf16 %v1155, %v1154
    %1158 = vrot.lane.b32.xlu0 %v526, 64
    %v1159 = vpop.permute.xlu0 %1158
    %v1162 = vsel %vm623, %v1156, 0
    %1164 = vmatprep.subr.bf16.mxu0 0
    %1165 = vmatpush1.bf16.msra.mxu0 0
    %1166 = vmatprep.subr.bf16.mxu0 0
    %1167 = vmatpush1.bf16.msra.mxu0 0
    %1168 = vmatprep.subr.bf16.mxu0 0
    %1169 = vmatpush1.bf16.msra.mxu0 0
    %1170 = vmatprep.subr.bf16.mxu0 0
    %1171 = vmatpush1.bf16.msra.mxu0 0
    %1172 = vmatprep.subr.bf16.mxu0 0
    %1173 = vmatpush1.bf16.msra.mxu0 0
    %1174 = vmatprep.subr.bf16.mxu0 0
    %1175 = vmatpush1.bf16.msra.mxu0 0
    %1176 = vmatprep.subr.bf16.mxu0 0
    %1177 = vmatpush1.bf16.msra.mxu0 0
    %1178 = vmatprep.subr.bf16.mxu0 0
    %1179 = vmatpush1.bf16.msra.mxu0 %v1159
    %1180 = vmatprep.subr.bf16.mxu0 0
    %1181 = vmatpush2.bf16.msra.mxu0 0
    %1182 = vmatprep.subr.bf16.mxu0 0
    %1183 = vmatpush2.bf16.msra.mxu0 0
    %1184 = vmatprep.subr.bf16.mxu0 0
    %1185 = vmatpush2.bf16.msra.mxu0 0
    %1186 = vmatprep.subr.bf16.mxu0 0
    %1187 = vmatpush2.bf16.msra.mxu0 0
    %1188 = vmatprep.subr.bf16.mxu0 0
    %1189 = vmatpush2.bf16.msra.mxu0 0
    %1190 = vmatprep.subr.bf16.mxu0 0
    %1191 = vmatpush2.bf16.msra.mxu0 0
    %1192 = vmatprep.subr.bf16.mxu0 0
    %1193 = vmatpush2.bf16.msra.mxu0 0
    %1194 = vmatprep.subr.bf16.mxu0 0
    %1195 = vmatpush2.bf16.msra.mxu0 0
    %1196 = vmatprep.mubr.bf16.mxu0 0
    %1197 = vmatmul.mubr.bf16.gmra.mxu0 %v1162
    %v1198 = vpop.f32.mrf.mxu0
    %v1199 = vadd.f32 0.0, %v1198
    %v1200 = vpop.f32.mrf.mxu0
    %v1201 = vpop.f32.mrf.mxu0
    %v1202 = vadd.f32 0.0, %v1201
    %v1203 = vpop.f32.mrf.mxu0
    %1204 = vdwg.mxu0
    %1205 = vrot.lane.b32.xlu0 %v527, 64
    %v1206 = vpop.permute.xlu0 %1205
    %v1209 = vsel %vm623, %v1157, 0
    %1211 = vmatprep.subr.bf16.mxu0 0
    %1212 = vmatpush1.bf16.msra.mxu0 0
    %1213 = vmatprep.subr.bf16.mxu0 0
    %1214 = vmatpush1.bf16.msra.mxu0 0
    %1215 = vmatprep.subr.bf16.mxu0 0
    %1216 = vmatpush1.bf16.msra.mxu0 0
    %1217 = vmatprep.subr.bf16.mxu0 0
    %1218 = vmatpush1.bf16.msra.mxu0 0
    %1219 = vmatprep.subr.bf16.mxu0 0
    %1220 = vmatpush1.bf16.msra.mxu0 0
    %1221 = vmatprep.subr.bf16.mxu0 0
    %1222 = vmatpush1.bf16.msra.mxu0 0
    %1223 = vmatprep.subr.bf16.mxu0 0
    %1224 = vmatpush1.bf16.msra.mxu0 0
    %1225 = vmatprep.subr.bf16.mxu0 0
    %1226 = vmatpush1.bf16.msra.mxu0 %v1206
    %1227 = vmatprep.subr.bf16.mxu0 0
    %1228 = vmatpush2.bf16.msra.mxu0 0
    %1229 = vmatprep.subr.bf16.mxu0 0
    %1230 = vmatpush2.bf16.msra.mxu0 0
    %1231 = vmatprep.subr.bf16.mxu0 0
    %1232 = vmatpush2.bf16.msra.mxu0 0
    %1233 = vmatprep.subr.bf16.mxu0 0
    %1234 = vmatpush2.bf16.msra.mxu0 0
    %1235 = vmatprep.subr.bf16.mxu0 0
    %1236 = vmatpush2.bf16.msra.mxu0 0
    %1237 = vmatprep.subr.bf16.mxu0 0
    %1238 = vmatpush2.bf16.msra.mxu0 0
    %1239 = vmatprep.subr.bf16.mxu0 0
    %1240 = vmatpush2.bf16.msra.mxu0 0
    %1241 = vmatprep.subr.bf16.mxu0 0
    %1242 = vmatpush2.bf16.msra.mxu0 0
    %1243 = vmatprep.mubr.bf16.mxu0 0
    %1244 = vmatmul.mubr.bf16.gmra.mxu0 %v1209
    %v1245 = vpop.f32.mrf.mxu0
    %v1246 = vadd.f32 0.0, %v1245
    %v1247 = vpop.f32.mrf.mxu0
    %v1248 = vpop.f32.mrf.mxu0
    %v1249 = vadd.f32 0.0, %v1248
    %v1250 = vpop.f32.mrf.mxu0
    %1251 = vdwg.mxu0
    %v1252 = vpack.c.bf16 %v1202, %v1199
    %v1253 = vpack.c.bf16 %v1249, %v1246
    %1256 = vrot.lane.b32.xlu0 %v1008, 32
    %v1257 = vpop.permute.xlu0 %1256
    %1258 = vrot.lane.b32.xlu0 %v1009, 32
    %v1259 = vpop.permute.xlu0 %1258
    %1262 = vrot.lane.b32.xlu0 %v1252, 64
    %v1263 = vpop.permute.xlu0 %1262
    %1264 = vrot.lane.b32.xlu0 %v1253, 64
    %v1265 = vpop.permute.xlu0 %1264
    %v1268 = vsel %vm528, %v758, %v1257
    %v1271 = vsel %vm528, %v759, %v1259
    %vm1272 = vcmask 523264
    %v1274 = vsel %vm1272, %v1268, %v1263
    %v1276 = vsel %vm1272, %v1271, %v1265
    %vm1277 = vcmask 785408
    %v1279 = vsel %vm1277, %v1274, 0
    %v1281 = vsel %vm1277, %v1276, 0
    %v1283 = vld [vmem:[%s6] sm:$0xf]
    %v1284 = vld [vmem:[%s6 + $0x4] sm:$0xf]
    %v1285 = vld [vmem:[%s6 + $0x8] sm:$0xf]
    %v1286 = vld [vmem:[%s6 + $0xc] sm:$0xf]
    %v1287 = vld [vmem:[%s6 + $0x10] sm:$0xf]
    %v1288 = vld [vmem:[%s6 + $0x14] sm:$0xf]
    %v1289 = vld [vmem:[%s6 + $0x18] sm:$0xf]
    %v1290 = vld [vmem:[%s6 + $0x1c] sm:$0xf]
    %v1291 = vld [vmem:[%s6 + $0x20] sm:$0xf]
    %v1292 = vld [vmem:[%s6 + $0x24] sm:$0xf]
    %v1293 = vld [vmem:[%s6 + $0x28] sm:$0xf]
    %v1294 = vld [vmem:[%s6 + $0x2c] sm:$0xf]
    %v1295 = vld [vmem:[%s6 + $0x30] sm:$0xf]
    %v1296 = vld [vmem:[%s6 + $0x34] sm:$0xf]
    %v1297 = vld [vmem:[%s6 + $0x38] sm:$0xf]
    %v1298 = vld [vmem:[%s6 + $0x3c] sm:$0xf]
    %v1315 = vunpack.c.l.b16 %v1283
    %v1316 = vunpack.c.l.b16 %v1284
    %v1317 = vunpack.c.l.b16 %v1285
    %v1318 = vunpack.c.l.b16 %v1286
    %v1319 = vunpack.c.l.b16 %v1287
    %v1320 = vunpack.c.l.b16 %v1288
    %v1321 = vunpack.c.l.b16 %v1289
    %v1322 = vunpack.c.l.b16 %v1290
    %v1323 = vunpack.c.l.b16 %v1291
    %v1324 = vunpack.c.l.b16 %v1292
    %v1325 = vunpack.c.l.b16 %v1293
    %v1326 = vunpack.c.l.b16 %v1294
    %v1327 = vunpack.c.l.b16 %v1295
    %v1328 = vunpack.c.l.b16 %v1296
    %v1329 = vunpack.c.l.b16 %v1297
    %v1330 = vunpack.c.l.b16 %v1298
    %v1331 = vpack.c.b16 %v1316, %v1315
    %v1332 = vpack.c.b16 %v1318, %v1317
    %v1333 = vpack.c.b16 %v1320, %v1319
    %v1334 = vpack.c.b16 %v1322, %v1321
    %v1335 = vpack.c.b16 %v1324, %v1323
    %v1336 = vpack.c.b16 %v1326, %v1325
    %v1337 = vpack.c.b16 %v1328, %v1327
    %v1338 = vpack.c.b16 %v1330, %v1329
    %1347 = vmatprep.subr.bf16.mxu0 0
    %1348 = vmatpush1.bf16.msra.mxu0 %v1338
    %1349 = vmatprep.subr.bf16.mxu0 0
    %1350 = vmatpush1.bf16.msra.mxu0 %v1337
    %1351 = vmatprep.subr.bf16.mxu0 0
    %1352 = vmatpush1.bf16.msra.mxu0 %v1336
    %1353 = vmatprep.subr.bf16.mxu0 0
    %1354 = vmatpush1.bf16.msra.mxu0 %v1335
    %1355 = vmatprep.subr.bf16.mxu0 0
    %1356 = vmatpush1.bf16.msra.mxu0 %v1334
    %1357 = vmatprep.subr.bf16.mxu0 0
    %1358 = vmatpush1.bf16.msra.mxu0 %v1333
    %1359 = vmatprep.subr.bf16.mxu0 0
    %1360 = vmatpush1.bf16.msra.mxu0 %v1332
    %1361 = vmatprep.subr.bf16.mxu0 0
    %1362 = vmatpush1.bf16.msra.mxu0 %v1331
    %1363 = vmatprep.subr.bf16.mxu0 0
    %1364 = vmatpush2.bf16.msra.mxu0 0
    %1365 = vmatprep.subr.bf16.mxu0 0
    %1366 = vmatpush2.bf16.msra.mxu0 0
    %1367 = vmatprep.subr.bf16.mxu0 0
    %1368 = vmatpush2.bf16.msra.mxu0 0
    %1369 = vmatprep.subr.bf16.mxu0 0
    %1370 = vmatpush2.bf16.msra.mxu0 0
    %1371 = vmatprep.subr.bf16.mxu0 0
    %1372 = vmatpush2.bf16.msra.mxu0 0
    %1373 = vmatprep.subr.bf16.mxu0 0
    %1374 = vmatpush2.bf16.msra.mxu0 0
    %1375 = vmatprep.subr.bf16.mxu0 0
    %1376 = vmatpush2.bf16.msra.mxu0 0
    %1377 = vmatprep.subr.bf16.mxu0 0
    %1378 = vmatpush2.bf16.msra.mxu0 0
    %1379 = vmatprep.mubr.bf16.mxu0 0
    %1380 = vmatmul.mubr.bf16.gmra.mxu0 %v1279
    %v1381 = vpop.f32.mrf.mxu0
    %v1382 = vadd.f32 0.0, %v1381
    %v1383 = vpop.f32.mrf.mxu0
    %v1384 = vpop.f32.mrf.mxu0
    %v1385 = vadd.f32 0.0, %v1384
    %v1386 = vpop.f32.mrf.mxu0
    %1387 = vmatprep.mubr.bf16.mxu0 0
    %1388 = vmatmul.mubr.bf16.gmra.mxu0 %v1281
    %v1389 = vpop.f32.mrf.mxu0
    %v1390 = vadd.f32 0.0, %v1389
    %v1391 = vpop.f32.mrf.mxu0
    %v1392 = vpop.f32.mrf.mxu0
    %v1393 = vadd.f32 0.0, %v1392
    %v1394 = vpop.f32.mrf.mxu0
    %1395 = vdwg.mxu0
    %v1396 = vadd.f32 %v170, %v1382
    %v1397 = vadd.f32 %v173, %v1385
    %v1398 = vadd.f32 %v178, %v1390
    %v1399 = vadd.f32 %v181, %v1393
    %v1400 = vld [vmem:[%s7] sm:$0x1]
    %v1402 = vlaneseq
    %v1403 = vshrl.u32 %v1402, 7
    %v1404 = vsub.s32 0, %v1403
    %v1405 = vrot.slane %v1400, %v1404
    %v1407 = vadd.f32 %v1396, %v1405
    %v1408 = vadd.f32 %v1397, %v1405
    %v1409 = vadd.f32 %v1398, %v1405
    %v1410 = vadd.f32 %v1399, %v1405
    %v1411 = vld [vmem:[%s8] sm:$0x1]
    %v1412 = vld [vmem:[%s9] sm:$0x1]
    %1413 = vadd.xlane.f32.xlu0 %v1407
    %v1414 = vpop.xlane.xlu0 %1413
    %1415 = vadd.xlane.f32.xlu0 %v1408
    %v1416 = vpop.xlane.xlu0 %1415
    %1417 = vadd.xlane.f32.xlu0 %v1409
    %v1418 = vpop.xlane.xlu0 %1417
    %1419 = vadd.xlane.f32.xlu0 %v1410
    %v1420 = vpop.xlane.xlu0 %1419
    %v1421 = vmul.f32 %v1414, 0.010416667
    %v1422 = vmul.f32 %v1416, 0.010416667
    %v1423 = vmul.f32 %v1418, 0.010416667
    %v1424 = vmul.f32 %v1420, 0.010416667
    %v1425 = vmul.f32 %v1407, %v1407
    %v1426 = vmul.f32 %v1408, %v1408
    %v1427 = vmul.f32 %v1409, %v1409
    %v1428 = vmul.f32 %v1410, %v1410
    %1429 = vadd.xlane.f32.xlu0 %v1425
    %v1430 = vpop.xlane.xlu0 %1429
    %1431 = vadd.xlane.f32.xlu0 %v1426
    %v1432 = vpop.xlane.xlu0 %1431
    %1433 = vadd.xlane.f32.xlu0 %v1427
    %v1434 = vpop.xlane.xlu0 %1433
    %1435 = vadd.xlane.f32.xlu0 %v1428
    %v1436 = vpop.xlane.xlu0 %1435
    %v1437 = vmul.f32 %v1430, 0.010416667
    %v1438 = vmul.f32 %v1432, 0.010416667
    %v1439 = vmul.f32 %v1434, 0.010416667
    %v1440 = vmul.f32 %v1436, 0.010416667
    %v1441 = vmul.f32 %v1421, %v1421
    %v1442 = vmul.f32 %v1422, %v1422
    %v1443 = vmul.f32 %v1423, %v1423
    %v1444 = vmul.f32 %v1424, %v1424
    %v1445 = vsub.f32 %v1437, %v1441
    %v1446 = vsub.f32 %v1438, %v1442
    %v1447 = vsub.f32 %v1439, %v1443
    %v1448 = vsub.f32 %v1440, %v1444
    %v1449 = vsub.f32 %v1407, %v1421
    %v1450 = vsub.f32 %v1408, %v1422
    %v1451 = vsub.f32 %v1409, %v1423
    %v1452 = vsub.f32 %v1410, %v1424
    %v1453 = vadd.f32 %v1445, 1e-05
    %v1454 = vadd.f32 %v1446, 1e-05
    %v1455 = vadd.f32 %v1447, 1e-05
    %v1456 = vadd.f32 %v1448, 1e-05
    %v1457 = vrsqrt.pop %v1453
    %v1458 = vrsqrt.pop %v1454
    %v1459 = vrsqrt.pop %v1455
    %v1460 = vrsqrt.pop %v1456
    %v1461 = vmul.f32 %v1449, %v1457
    %v1462 = vmul.f32 %v1450, %v1458
    %v1463 = vmul.f32 %v1451, %v1459
    %v1464 = vmul.f32 %v1452, %v1460
    %v1466 = vlaneseq
    %v1467 = vshrl.u32 %v1466, 7
    %v1468 = vsub.s32 0, %v1467
    %v1469 = vrot.slane %v1411, %v1468
    %v1471 = vmul.f32 %v1461, %v1469
    %v1472 = vmul.f32 %v1462, %v1469
    %v1473 = vmul.f32 %v1463, %v1469
    %v1474 = vmul.f32 %v1464, %v1469
    %v1476 = vlaneseq
    %v1477 = vshrl.u32 %v1476, 7
    %v1478 = vsub.s32 0, %v1477
    %v1479 = vrot.slane %v1412, %v1478
    %v1481 = vadd.f32 %v1471, %v1479
    %v1482 = vadd.f32 %v1472, %v1479
    %v1483 = vadd.f32 %v1473, %v1479
    %v1484 = vadd.f32 %v1474, %v1479
    %v1485 = vpack.c.bf16 %v1482, %v1481
    %v1486 = vpack.c.bf16 %v1484, %v1483
    %v1487 = vld [vmem:[%s10] sm:$0xff]
    %v1488 = vld [vmem:[%s10 + $0x8] sm:$0xf]
    %v1489 = vld [vmem:[%s10 + $0xc] sm:$0xff]
    %v1490 = vld [vmem:[%s10 + $0x14] sm:$0xf]
    %v1491 = vld [vmem:[%s10 + $0x18] sm:$0xff]
    %v1492 = vld [vmem:[%s10 + $0x20] sm:$0xf]
    %v1493 = vld [vmem:[%s10 + $0x24] sm:$0xff]
    %v1494 = vld [vmem:[%s10 + $0x2c] sm:$0xf]
    %v1495 = vld [vmem:[%s10 + $0x30] sm:$0xff]
    %v1496 = vld [vmem:[%s10 + $0x38] sm:$0xf]
    %v1497 = vld [vmem:[%s10 + $0x3c] sm:$0xff]
    %v1498 = vld [vmem:[%s10 + $0x44] sm:$0xf]
    %v1499 = vld [vmem:[%s10 + $0x48] sm:$0xff]
    %v1500 = vld [vmem:[%s10 + $0x50] sm:$0xf]
    %v1501 = vld [vmem:[%s10 + $0x54] sm:$0xff]
    %v1502 = vld [vmem:[%s10 + $0x5c] sm:$0xf]
    %v1503 = vld [vmem:[%s10 + $0x60] sm:$0xff]
    %v1504 = vld [vmem:[%s10 + $0x68] sm:$0xf]
    %v1505 = vld [vmem:[%s10 + $0x6c] sm:$0xff]
    %v1506 = vld [vmem:[%s10 + $0x74] sm:$0xf]
    %v1507 = vld [vmem:[%s10 + $0x78] sm:$0xff]
    %v1508 = vld [vmem:[%s10 + $0x80] sm:$0xf]
    %v1509 = vld [vmem:[%s10 + $0x84] sm:$0xff]
    %v1510 = vld [vmem:[%s10 + $0x8c] sm:$0xf]
    %v1511 = vld [vmem:[%s10 + $0x90] sm:$0xff]
    %v1512 = vld [vmem:[%s10 + $0x98] sm:$0xf]
    %v1513 = vld [vmem:[%s10 + $0x9c] sm:$0xff]
    %v1514 = vld [vmem:[%s10 + $0xa4] sm:$0xf]
    %v1515 = vld [vmem:[%s10 + $0xa8] sm:$0xff]
    %v1516 = vld [vmem:[%s10 + $0xb0] sm:$0xf]
    %v1517 = vld [vmem:[%s10 + $0xb4] sm:$0xff]
    %v1518 = vld [vmem:[%s10 + $0xbc] sm:$0xf]
    %v1519 = vld [vmem:[%s11] sm:$0x7]
    %v1521 = vlaneseq
    %v1522 = vshrl.u32 %v1521, 7
    %v1523 = vsub.s32 0, %v1522
    %v1524 = vrot.slane %v1519, %v1523
    %v1525 = vlaneseq
    %v1526 = vshrl.u32 %v1525, 7
    %v1527 = vsub.s32 1, %v1526
    %v1528 = vrot.slane %v1519, %v1527
    %v1529 = vlaneseq
    %v1530 = vshrl.u32 %v1529, 7
    %v1531 = vsub.s32 2, %v1530
    %v1532 = vrot.slane %v1519, %v1531
    %v1568 = vunpack.c.l.b16 %v1487
    %v1569 = vunpack.c.h.b16 %v1487
    %v1570 = vunpack.c.l.b16 %v1488
    %v1571 = vunpack.c.l.b16 %v1489
    %v1572 = vunpack.c.h.b16 %v1489
    %v1573 = vunpack.c.l.b16 %v1490
    %v1574 = vunpack.c.l.b16 %v1491
    %v1575 = vunpack.c.h.b16 %v1491
    %v1576 = vunpack.c.l.b16 %v1492
    %v1577 = vunpack.c.l.b16 %v1493
    %v1578 = vunpack.c.h.b16 %v1493
    %v1579 = vunpack.c.l.b16 %v1494
    %v1580 = vunpack.c.l.b16 %v1495
    %v1581 = vunpack.c.h.b16 %v1495
    %v1582 = vunpack.c.l.b16 %v1496
    %v1583 = vunpack.c.l.b16 %v1497
    %v1584 = vunpack.c.h.b16 %v1497
    %v1585 = vunpack.c.l.b16 %v1498
    %v1586 = vunpack.c.l.b16 %v1499
    %v1587 = vunpack.c.h.b16 %v1499
    %v1588 = vunpack.c.l.b16 %v1500
    %v1589 = vunpack.c.l.b16 %v1501
    %v1590 = vunpack.c.h.b16 %v1501
    %v1591 = vunpack.c.l.b16 %v1502
    %v1592 = vunpack.c.l.b16 %v1503
    %v1593 = vunpack.c.h.b16 %v1503
    %v1594 = vunpack.c.l.b16 %v1504
    %v1595 = vunpack.c.l.b16 %v1505
    %v1596 = vunpack.c.h.b16 %v1505
    %v1597 = vunpack.c.l.b16 %v1506
    %v1598 = vunpack.c.l.b16 %v1507
    %v1599 = vunpack.c.h.b16 %v1507
    %v1600 = vunpack.c.l.b16 %v1508
    %v1601 = vunpack.c.l.b16 %v1509
    %v1602 = vunpack.c.h.b16 %v1509
    %v1603 = vunpack.c.l.b16 %v1510
    %v1604 = vunpack.c.l.b16 %v1511
    %v1605 = vunpack.c.h.b16 %v1511
    %v1606 = vunpack.c.l.b16 %v1512
    %v1607 = vunpack.c.l.b16 %v1513
    %v1608 = vunpack.c.h.b16 %v1513
    %v1609 = vunpack.c.l.b16 %v1514
    %v1610 = vunpack.c.l.b16 %v1515
    %v1611 = vunpack.c.h.b16 %v1515
    %v1612 = vunpack.c.l.b16 %v1516
    %v1613 = vunpack.c.l.b16 %v1517
    %v1614 = vunpack.c.h.b16 %v1517
    %v1615 = vunpack.c.l.b16 %v1518
    %v1616 = vpack.c.b16 %v1571, %v1568
    %v1617 = vpack.c.b16 %v1572, %v1569
    %v1618 = vpack.c.b16 %v1573, %v1570
    %v1619 = vpack.c.b16 %v1577, %v1574
    %v1620 = vpack.c.b16 %v1578, %v1575
    %v1621 = vpack.c.b16 %v1579, %v1576
    %v1622 = vpack.c.b16 %v1583, %v1580
    %v1623 = vpack.c.b16 %v1584, %v1581
    %v1624 = vpack.c.b16 %v1585, %v1582
    %v1625 = vpack.c.b16 %v1589, %v1586
    %v1626 = vpack.c.b16 %v1590, %v1587
    %v1627 = vpack.c.b16 %v1591, %v1588
    %v1628 = vpack.c.b16 %v1595, %v1592
    %v1629 = vpack.c.b16 %v1596, %v1593
    %v1630 = vpack.c.b16 %v1597, %v1594
    %v1631 = vpack.c.b16 %v1601, %v1598
    %v1632 = vpack.c.b16 %v1602, %v1599
    %v1633 = vpack.c.b16 %v1603, %v1600
    %v1634 = vpack.c.b16 %v1607, %v1604
    %v1635 = vpack.c.b16 %v1608, %v1605
    %v1636 = vpack.c.b16 %v1609, %v1606
    %v1637 = vpack.c.b16 %v1613, %v1610
    %v1638 = vpack.c.b16 %v1614, %v1611
    %v1639 = vpack.c.b16 %v1615, %v1612
    %1664 = vmatprep.subr.bf16.mxu0 %v1638
    %1665 = vmatpush1.bf16.msra.mxu0 %v1637
    %1666 = vmatprep.subr.bf16.mxu0 %v1635
    %1667 = vmatpush1.bf16.msra.mxu0 %v1634
    %1668 = vmatprep.subr.bf16.mxu0 %v1632
    %1669 = vmatpush1.bf16.msra.mxu0 %v1631
    %1670 = vmatprep.subr.bf16.mxu0 %v1629
    %1671 = vmatpush1.bf16.msra.mxu0 %v1628
    %1672 = vmatprep.subr.bf16.mxu0 %v1626
    %1673 = vmatpush1.bf16.msra.mxu0 %v1625
    %1674 = vmatprep.subr.bf16.mxu0 %v1623
    %1675 = vmatpush1.bf16.msra.mxu0 %v1622
    %1676 = vmatprep.subr.bf16.mxu0 %v1620
    %1677 = vmatpush1.bf16.msra.mxu0 %v1619
    %1678 = vmatprep.subr.bf16.mxu0 %v1617
    %1679 = vmatpush1.bf16.msra.mxu0 %v1616
    %1680 = vmatprep.subr.bf16.mxu0 0
    %1681 = vmatpush2.bf16.msra.mxu0 0
    %1682 = vmatprep.subr.bf16.mxu0 0
    %1683 = vmatpush2.bf16.msra.mxu0 0
    %1684 = vmatprep.subr.bf16.mxu0 0
    %1685 = vmatpush2.bf16.msra.mxu0 0
    %1686 = vmatprep.subr.bf16.mxu0 0
    %1687 = vmatpush2.bf16.msra.mxu0 0
    %1688 = vmatprep.subr.bf16.mxu0 0
    %1689 = vmatpush2.bf16.msra.mxu0 0
    %1690 = vmatprep.subr.bf16.mxu0 0
    %1691 = vmatpush2.bf16.msra.mxu0 0
    %1692 = vmatprep.subr.bf16.mxu0 0
    %1693 = vmatpush2.bf16.msra.mxu0 0
    %1694 = vmatprep.subr.bf16.mxu0 0
    %1695 = vmatpush2.bf16.msra.mxu0 0
    %1696 = vmatprep.mubr.bf16.mxu0 0
    %1697 = vmatmul.mubr.bf16.gmra.mxu0 %v1485
    %v1698 = vpop.f32.mrf.mxu0
    %v1699 = vadd.f32 %v1524, %v1698
    %v1700 = vpop.f32.mrf.mxu0
    %v1701 = vadd.f32 %v1528, %v1700
    %v1702 = vpop.f32.mrf.mxu0
    %v1703 = vadd.f32 %v1524, %v1702
    %v1704 = vpop.f32.mrf.mxu0
    %v1705 = vadd.f32 %v1528, %v1704
    %1706 = vmatprep.mubr.bf16.mxu0 0
    %1707 = vmatmul.mubr.bf16.gmra.mxu0 %v1486
    %v1708 = vpop.f32.mrf.mxu0
    %v1709 = vadd.f32 %v1524, %v1708
    %v1710 = vpop.f32.mrf.mxu0
    %v1711 = vadd.f32 %v1528, %v1710
    %v1712 = vpop.f32.mrf.mxu0
    %v1713 = vadd.f32 %v1524, %v1712
    %v1714 = vpop.f32.mrf.mxu0
    %v1715 = vadd.f32 %v1528, %v1714
    %1716 = vdwg.mxu0
    %1717 = vmatprep.subr.bf16.mxu0 0
    %1718 = vmatpush1.bf16.msra.mxu0 %v1639
    %1719 = vmatprep.subr.bf16.mxu0 0
    %1720 = vmatpush1.bf16.msra.mxu0 %v1636
    %1721 = vmatprep.subr.bf16.mxu0 0
    %1722 = vmatpush1.bf16.msra.mxu0 %v1633
    %1723 = vmatprep.subr.bf16.mxu0 0
    %1724 = vmatpush1.bf16.msra.mxu0 %v1630
    %1725 = vmatprep.subr.bf16.mxu0 0
    %1726 = vmatpush1.bf16.msra.mxu0 %v1627
    %1727 = vmatprep.subr.bf16.mxu0 0
    %1728 = vmatpush1.bf16.msra.mxu0 %v1624
    %1729 = vmatprep.subr.bf16.mxu0 0
    %1730 = vmatpush1.bf16.msra.mxu0 %v1621
    %1731 = vmatprep.subr.bf16.mxu0 0
    %1732 = vmatpush1.bf16.msra.mxu0 %v1618
    %1733 = vmatprep.subr.bf16.mxu0 0
    %1734 = vmatpush2.bf16.msra.mxu0 0
    %1735 = vmatprep.subr.bf16.mxu0 0
    %1736 = vmatpush2.bf16.msra.mxu0 0
    %1737 = vmatprep.subr.bf16.mxu0 0
    %1738 = vmatpush2.bf16.msra.mxu0 0
    %1739 = vmatprep.subr.bf16.mxu0 0
    %1740 = vmatpush2.bf16.msra.mxu0 0
    %1741 = vmatprep.subr.bf16.mxu0 0
    %1742 = vmatpush2.bf16.msra.mxu0 0
    %1743 = vmatprep.subr.bf16.mxu0 0
    %1744 = vmatpush2.bf16.msra.mxu0 0
    %1745 = vmatprep.subr.bf16.mxu0 0
    %1746 = vmatpush2.bf16.msra.mxu0 0
    %1747 = vmatprep.subr.bf16.mxu0 0
    %1748 = vmatpush2.bf16.msra.mxu0 0
    %1749 = vmatprep.mubr.bf16.mxu0 0
    %1750 = vmatmul.mubr.bf16.gmra.mxu0 %v1485
    %v1751 = vpop.f32.mrf.mxu0
    %v1752 = vadd.f32 %v1532, %v1751
    %v1753 = vpop.f32.mrf.mxu0
    %v1754 = vpop.f32.mrf.mxu0
    %v1755 = vadd.f32 %v1532, %v1754
    %v1756 = vpop.f32.mrf.mxu0
    %1757 = vmatprep.mubr.bf16.mxu0 0
    %1758 = vmatmul.mubr.bf16.gmra.mxu0 %v1486
    %v1759 = vpop.f32.mrf.mxu0
    %v1760 = vadd.f32 %v1532, %v1759
    %v1761 = vpop.f32.mrf.mxu0
    %v1762 = vpop.f32.mrf.mxu0
    %v1763 = vadd.f32 %v1532, %v1762
    %v1764 = vpop.f32.mrf.mxu0
    %1765 = vdwg.mxu0
    %v1766 = vmul.f32 %v1699, %v1699
    %v1767 = vmul.f32 %v1701, %v1701
    %v1768 = vmul.f32 %v1752, %v1752
    %v1769 = vmul.f32 %v1703, %v1703
    %v1770 = vmul.f32 %v1705, %v1705
    %v1771 = vmul.f32 %v1755, %v1755
    %v1772 = vmul.f32 %v1709, %v1709
    %v1773 = vmul.f32 %v1711, %v1711
    %v1774 = vmul.f32 %v1760, %v1760
    %v1775 = vmul.f32 %v1713, %v1713
    %v1776 = vmul.f32 %v1715, %v1715
    %v1777 = vmul.f32 %v1763, %v1763
    %v1778 = vmul.f32 %v1699, %v1766
    %v1779 = vmul.f32 %v1701, %v1767
    %v1780 = vmul.f32 %v1752, %v1768
    %v1781 = vmul.f32 %v1703, %v1769
    %v1782 = vmul.f32 %v1705, %v1770
    %v1783 = vmul.f32 %v1755, %v1771
    %v1784 = vmul.f32 %v1709, %v1772
    %v1785 = vmul.f32 %v1711, %v1773
    %v1786 = vmul.f32 %v1760, %v1774
    %v1787 = vmul.f32 %v1713, %v1775
    %v1788 = vmul.f32 %v1715, %v1776
    %v1789 = vmul.f32 %v1763, %v1777
    %v1790 = vmul.f32 %v1778, 0.044715
    %v1791 = vmul.f32 %v1779, 0.044715
    %v1792 = vmul.f32 %v1780, 0.044715
    %v1793 = vmul.f32 %v1781, 0.044715
    %v1794 = vmul.f32 %v1782, 0.044715
    %v1795 = vmul.f32 %v1783, 0.044715
    %v1796 = vmul.f32 %v1784, 0.044715
    %v1797 = vmul.f32 %v1785, 0.044715
    %v1798 = vmul.f32 %v1786, 0.044715
    %v1799 = vmul.f32 %v1787, 0.044715
    %v1800 = vmul.f32 %v1788, 0.044715
    %v1801 = vmul.f32 %v1789, 0.044715
    %v1802 = vadd.f32 %v1699, %v1790
    %v1803 = vadd.f32 %v1701, %v1791
    %v1804 = vadd.f32 %v1752, %v1792
    %v1805 = vadd.f32 %v1703, %v1793
    %v1806 = vadd.f32 %v1705, %v1794
    %v1807 = vadd.f32 %v1755, %v1795
    %v1808 = vadd.f32 %v1709, %v1796
    %v1809 = vadd.f32 %v1711, %v1797
    %v1810 = vadd.f32 %v1760, %v1798
    %v1811 = vadd.f32 %v1713, %v1799
    %v1812 = vadd.f32 %v1715, %v1800
    %v1813 = vadd.f32 %v1763, %v1801
    %v1814 = vmul.f32 %v1802, 0.7978846
    %v1815 = vmul.f32 %v1803, 0.7978846
    %v1816 = vmul.f32 %v1804, 0.7978846
    %v1817 = vmul.f32 %v1805, 0.7978846
    %v1818 = vmul.f32 %v1806, 0.7978846
    %v1819 = vmul.f32 %v1807, 0.7978846
    %v1820 = vmul.f32 %v1808, 0.7978846
    %v1821 = vmul.f32 %v1809, 0.7978846
    %v1822 = vmul.f32 %v1810, 0.7978846
    %v1823 = vmul.f32 %v1811, 0.7978846
    %v1824 = vmul.f32 %v1812, 0.7978846
    %v1825 = vmul.f32 %v1813, 0.7978846
    %v1826 = vtanh.pop %v1814
    %v1827 = vtanh.pop %v1815
    %v1828 = vtanh.pop %v1816
    %v1829 = vtanh.pop %v1817
    %v1830 = vtanh.pop %v1818
    %v1831 = vtanh.pop %v1819
    %v1832 = vtanh.pop %v1820
    %v1833 = vtanh.pop %v1821
    %v1834 = vtanh.pop %v1822
    %v1835 = vtanh.pop %v1823
    %v1836 = vtanh.pop %v1824
    %v1837 = vtanh.pop %v1825
    %v1838 = vadd.f32 %v1826, 1.0
    %v1839 = vadd.f32 %v1827, 1.0
    %v1840 = vadd.f32 %v1828, 1.0
    %v1841 = vadd.f32 %v1829, 1.0
    %v1842 = vadd.f32 %v1830, 1.0
    %v1843 = vadd.f32 %v1831, 1.0
    %v1844 = vadd.f32 %v1832, 1.0
    %v1845 = vadd.f32 %v1833, 1.0
    %v1846 = vadd.f32 %v1834, 1.0
    %v1847 = vadd.f32 %v1835, 1.0
    %v1848 = vadd.f32 %v1836, 1.0
    %v1849 = vadd.f32 %v1837, 1.0
    %v1850 = vmul.f32 %v1838, 0.5
    %v1851 = vmul.f32 %v1839, 0.5
    %v1852 = vmul.f32 %v1840, 0.5
    %v1853 = vmul.f32 %v1841, 0.5
    %v1854 = vmul.f32 %v1842, 0.5
    %v1855 = vmul.f32 %v1843, 0.5
    %v1856 = vmul.f32 %v1844, 0.5
    %v1857 = vmul.f32 %v1845, 0.5
    %v1858 = vmul.f32 %v1846, 0.5
    %v1859 = vmul.f32 %v1847, 0.5
    %v1860 = vmul.f32 %v1848, 0.5
    %v1861 = vmul.f32 %v1849, 0.5
    %v1862 = vmul.f32 %v1699, %v1850
    %v1863 = vmul.f32 %v1701, %v1851
    %v1864 = vmul.f32 %v1752, %v1852
    %v1865 = vmul.f32 %v1703, %v1853
    %v1866 = vmul.f32 %v1705, %v1854
    %v1867 = vmul.f32 %v1755, %v1855
    %v1868 = vmul.f32 %v1709, %v1856
    %v1869 = vmul.f32 %v1711, %v1857
    %v1870 = vmul.f32 %v1760, %v1858
    %v1871 = vmul.f32 %v1713, %v1859
    %v1872 = vmul.f32 %v1715, %v1860
    %v1873 = vmul.f32 %v1763, %v1861
    %v1874 = vpack.c.bf16 %v1865, %v1862
    %v1875 = vpack.c.bf16 %v1866, %v1863
    %v1876 = vpack.c.bf16 %v1867, %v1864
    %v1877 = vpack.c.bf16 %v1871, %v1868
    %v1878 = vpack.c.bf16 %v1872, %v1869
    %v1879 = vpack.c.bf16 %v1873, %v1870
    %v1880 = vld [vmem:[%s12] sm:$0xf]
    %v1881 = vld [vmem:[%s12 + $0x4] sm:$0xf]
    %v1882 = vld [vmem:[%s12 + $0x8] sm:$0xf]
    %v1883 = vld [vmem:[%s12 + $0xc] sm:$0xf]
    %v1884 = vld [vmem:[%s12 + $0x10] sm:$0xf]
    %v1885 = vld [vmem:[%s12 + $0x14] sm:$0xf]
    %v1886 = vld [vmem:[%s12 + $0x18] sm:$0xf]
    %v1887 = vld [vmem:[%s12 + $0x1c] sm:$0xf]
    %v1888 = vld [vmem:[%s12 + $0x20] sm:$0xf]
    %v1889 = vld [vmem:[%s12 + $0x24] sm:$0xf]
    %v1890 = vld [vmem:[%s12 + $0x28] sm:$0xf]
    %v1891 = vld [vmem:[%s12 + $0x2c] sm:$0xf]
    %v1892 = vld [vmem:[%s12 + $0x30] sm:$0xf]
    %v1893 = vld [vmem:[%s12 + $0x34] sm:$0xf]
    %v1894 = vld [vmem:[%s12 + $0x38] sm:$0xf]
    %v1895 = vld [vmem:[%s12 + $0x3c] sm:$0xf]
    %v1896 = vld [vmem:[%s12 + $0x40] sm:$0xf]
    %v1897 = vld [vmem:[%s12 + $0x44] sm:$0xf]
    %v1898 = vld [vmem:[%s12 + $0x48] sm:$0xf]
    %v1899 = vld [vmem:[%s12 + $0x4c] sm:$0xf]
    %v1900 = vld [vmem:[%s12 + $0x50] sm:$0xf]
    %v1901 = vld [vmem:[%s12 + $0x54] sm:$0xf]
    %v1902 = vld [vmem:[%s12 + $0x58] sm:$0xf]
    %v1903 = vld [vmem:[%s12 + $0x5c] sm:$0xf]
    %v1904 = vld [vmem:[%s12 + $0x60] sm:$0xf]
    %v1905 = vld [vmem:[%s12 + $0x64] sm:$0xf]
    %v1906 = vld [vmem:[%s12 + $0x68] sm:$0xf]
    %v1907 = vld [vmem:[%s12 + $0x6c] sm:$0xf]
    %v1908 = vld [vmem:[%s12 + $0x70] sm:$0xf]
    %v1909 = vld [vmem:[%s12 + $0x74] sm:$0xf]
    %v1910 = vld [vmem:[%s12 + $0x78] sm:$0xf]
    %v1911 = vld [vmem:[%s12 + $0x7c] sm:$0xf]
    %v1912 = vld [vmem:[%s12 + $0x80] sm:$0xf]
    %v1913 = vld [vmem:[%s12 + $0x84] sm:$0xf]
    %v1914 = vld [vmem:[%s12 + $0x88] sm:$0xf]
    %v1915 = vld [vmem:[%s12 + $0x8c] sm:$0xf]
    %v1916 = vld [vmem:[%s12 + $0x90] sm:$0xf]
    %v1917 = vld [vmem:[%s12 + $0x94] sm:$0xf]
    %v1918 = vld [vmem:[%s12 + $0x98] sm:$0xf]
    %v1919 = vld [vmem:[%s12 + $0x9c] sm:$0xf]
    %v1920 = vld [vmem:[%s12 + $0xa0] sm:$0xf]
    %v1921 = vld [vmem:[%s12 + $0xa4] sm:$0xf]
    %v1922 = vld [vmem:[%s12 + $0xa8] sm:$0xf]
    %v1923 = vld [vmem:[%s12 + $0xac] sm:$0xf]
    %v1924 = vld [vmem:[%s12 + $0xb0] sm:$0xf]
    %v1925 = vld [vmem:[%s12 + $0xb4] sm:$0xf]
    %v1926 = vld [vmem:[%s12 + $0xb8] sm:$0xf]
    %v1927 = vld [vmem:[%s12 + $0xbc] sm:$0xf]
    %v1976 = vunpack.c.l.b16 %v1880
    %v1977 = vunpack.c.l.b16 %v1881
    %v1978 = vunpack.c.l.b16 %v1882
    %v1979 = vunpack.c.l.b16 %v1883
    %v1980 = vunpack.c.l.b16 %v1884
    %v1981 = vunpack.c.l.b16 %v1885
    %v1982 = vunpack.c.l.b16 %v1886
    %v1983 = vunpack.c.l.b16 %v1887
    %v1984 = vunpack.c.l.b16 %v1888
    %v1985 = vunpack.c.l.b16 %v1889
    %v1986 = vunpack.c.l.b16 %v1890
    %v1987 = vunpack.c.l.b16 %v1891
    %v1988 = vunpack.c.l.b16 %v1892
    %v1989 = vunpack.c.l.b16 %v1893
    %v1990 = vunpack.c.l.b16 %v1894
    %v1991 = vunpack.c.l.b16 %v1895
    %v1992 = vunpack.c.l.b16 %v1896
    %v1993 = vunpack.c.l.b16 %v1897
    %v1994 = vunpack.c.l.b16 %v1898
    %v1995 = vunpack.c.l.b16 %v1899
    %v1996 = vunpack.c.l.b16 %v1900
    %v1997 = vunpack.c.l.b16 %v1901
    %v1998 = vunpack.c.l.b16 %v1902
    %v1999 = vunpack.c.l.b16 %v1903
    %v2000 = vunpack.c.l.b16 %v1904
    %v2001 = vunpack.c.l.b16 %v1905
    %v2002 = vunpack.c.l.b16 %v1906
    %v2003 = vunpack.c.l.b16 %v1907
    %v2004 = vunpack.c.l.b16 %v1908
    %v2005 = vunpack.c.l.b16 %v1909
    %v2006 = vunpack.c.l.b16 %v1910
    %v2007 = vunpack.c.l.b16 %v1911
    %v2008 = vunpack.c.l.b16 %v1912
    %v2009 = vunpack.c.l.b16 %v1913
    %v2010 = vunpack.c.l.b16 %v1914
    %v2011 = vunpack.c.l.b16 %v1915
    %v2012 = vunpack.c.l.b16 %v1916
    %v2013 = vunpack.c.l.b16 %v1917
    %v2014 = vunpack.c.l.b16 %v1918
    %v2015 = vunpack.c.l.b16 %v1919
    %v2016 = vunpack.c.l.b16 %v1920
    %v2017 = vunpack.c.l.b16 %v1921
    %v2018 = vunpack.c.l.b16 %v1922
    %v2019 = vunpack.c.l.b16 %v1923
    %v2020 = vunpack.c.l.b16 %v1924
    %v2021 = vunpack.c.l.b16 %v1925
    %v2022 = vunpack.c.l.b16 %v1926
    %v2023 = vunpack.c.l.b16 %v1927
    %v2024 = vpack.c.b16 %v1977, %v1976
    %v2025 = vpack.c.b16 %v1979, %v1978
    %v2026 = vpack.c.b16 %v1981, %v1980
    %v2027 = vpack.c.b16 %v1983, %v1982
    %v2028 = vpack.c.b16 %v1985, %v1984
    %v2029 = vpack.c.b16 %v1987, %v1986
    %v2030 = vpack.c.b16 %v1989, %v1988
    %v2031 = vpack.c.b16 %v1991, %v1990
    %v2032 = vpack.c.b16 %v1993, %v1992
    %v2033 = vpack.c.b16 %v1995, %v1994
    %v2034 = vpack.c.b16 %v1997, %v1996
    %v2035 = vpack.c.b16 %v1999, %v1998
    %v2036 = vpack.c.b16 %v2001, %v2000
    %v2037 = vpack.c.b16 %v2003, %v2002
    %v2038 = vpack.c.b16 %v2005, %v2004
    %v2039 = vpack.c.b16 %v2007, %v2006
    %v2040 = vpack.c.b16 %v2009, %v2008
    %v2041 = vpack.c.b16 %v2011, %v2010
    %v2042 = vpack.c.b16 %v2013, %v2012
    %v2043 = vpack.c.b16 %v2015, %v2014
    %v2044 = vpack.c.b16 %v2017, %v2016
    %v2045 = vpack.c.b16 %v2019, %v2018
    %v2046 = vpack.c.b16 %v2021, %v2020
    %v2047 = vpack.c.b16 %v2023, %v2022
    %2072 = vmatprep.subr.bf16.mxu0 0
    %2073 = vmatpush1.bf16.msra.mxu0 %v2031
    %2074 = vmatprep.subr.bf16.mxu0 0
    %2075 = vmatpush1.bf16.msra.mxu0 %v2030
    %2076 = vmatprep.subr.bf16.mxu0 0
    %2077 = vmatpush1.bf16.msra.mxu0 %v2029
    %2078 = vmatprep.subr.bf16.mxu0 0
    %2079 = vmatpush1.bf16.msra.mxu0 %v2028
    %2080 = vmatprep.subr.bf16.mxu0 0
    %2081 = vmatpush1.bf16.msra.mxu0 %v2027
    %2082 = vmatprep.subr.bf16.mxu0 0
    %2083 = vmatpush1.bf16.msra.mxu0 %v2026
    %2084 = vmatprep.subr.bf16.mxu0 0
    %2085 = vmatpush1.bf16.msra.mxu0 %v2025
    %2086 = vmatprep.subr.bf16.mxu0 0
    %2087 = vmatpush1.bf16.msra.mxu0 %v2024
    %2088 = vmatprep.subr.bf16.mxu0 0
    %2089 = vmatpush2.bf16.msra.mxu0 %v2039
    %2090 = vmatprep.subr.bf16.mxu0 0
    %2091 = vmatpush2.bf16.msra.mxu0 %v2038
    %2092 = vmatprep.subr.bf16.mxu0 0
    %2093 = vmatpush2.bf16.msra.mxu0 %v2037
    %2094 = vmatprep.subr.bf16.mxu0 0
    %2095 = vmatpush2.bf16.msra.mxu0 %v2036
    %2096 = vmatprep.subr.bf16.mxu0 0
    %2097 = vmatpush2.bf16.msra.mxu0 %v2035
    %2098 = vmatprep.subr.bf16.mxu0 0
    %2099 = vmatpush2.bf16.msra.mxu0 %v2034
    %2100 = vmatprep.subr.bf16.mxu0 0
    %2101 = vmatpush2.bf16.msra.mxu0 %v2033
    %2102 = vmatprep.subr.bf16.mxu0 0
    %2103 = vmatpush2.bf16.msra.mxu0 %v2032
    %2104 = vmatprep.mubr.bf16.mxu0 %v1875
    %2105 = vmatmul.mubr.bf16.gmra.mxu0 %v1874
    %v2106 = vpop.f32.mrf.mxu0
    %v2107 = vadd.f32 0.0, %v2106
    %v2108 = vpop.f32.mrf.mxu0
    %v2109 = vpop.f32.mrf.mxu0
    %v2110 = vadd.f32 0.0, %v2109
    %v2111 = vpop.f32.mrf.mxu0
    %2112 = vmatprep.mubr.bf16.mxu0 %v1878
    %2113 = vmatmul.mubr.bf16.gmra.mxu0 %v1877
    %v2114 = vpop.f32.mrf.mxu0
    %v2115 = vadd.f32 0.0, %v2114
    %v2116 = vpop.f32.mrf.mxu0
    %v2117 = vpop.f32.mrf.mxu0
    %v2118 = vadd.f32 0.0, %v2117
    %v2119 = vpop.f32.mrf.mxu0
    %2120 = vdwg.mxu0
    %2121 = vmatprep.subr.bf16.mxu0 0
    %2122 = vmatpush1.bf16.msra.mxu0 %v2047
    %2123 = vmatprep.subr.bf16.mxu0 0
    %2124 = vmatpush1.bf16.msra.mxu0 %v2046
    %2125 = vmatprep.subr.bf16.mxu0 0
    %2126 = vmatpush1.bf16.msra.mxu0 %v2045
    %2127 = vmatprep.subr.bf16.mxu0 0
    %2128 = vmatpush1.bf16.msra.mxu0 %v2044
    %2129 = vmatprep.subr.bf16.mxu0 0
    %2130 = vmatpush1.bf16.msra.mxu0 %v2043
    %2131 = vmatprep.subr.bf16.mxu0 0
    %2132 = vmatpush1.bf16.msra.mxu0 %v2042
    %2133 = vmatprep.subr.bf16.mxu0 0
    %2134 = vmatpush1.bf16.msra.mxu0 %v2041
    %2135 = vmatprep.subr.bf16.mxu0 0
    %2136 = vmatpush1.bf16.msra.mxu0 %v2040
    %2137 = vmatprep.subr.bf16.mxu0 0
    %2138 = vmatpush2.bf16.msra.mxu0 0
    %2139 = vmatprep.subr.bf16.mxu0 0
    %2140 = vmatpush2.bf16.msra.mxu0 0
    %2141 = vmatprep.subr.bf16.mxu0 0
    %2142 = vmatpush2.bf16.msra.mxu0 0
    %2143 = vmatprep.subr.bf16.mxu0 0
    %2144 = vmatpush2.bf16.msra.mxu0 0
    %2145 = vmatprep.subr.bf16.mxu0 0
    %2146 = vmatpush2.bf16.msra.mxu0 0
    %2147 = vmatprep.subr.bf16.mxu0 0
    %2148 = vmatpush2.bf16.msra.mxu0 0
    %2149 = vmatprep.subr.bf16.mxu0 0
    %2150 = vmatpush2.bf16.msra.mxu0 0
    %2151 = vmatprep.subr.bf16.mxu0 0
    %2152 = vmatpush2.bf16.msra.mxu0 0
    %2153 = vmatprep.mubr.bf16.mxu0 0
    %2154 = vmatmul.mubr.bf16.gmra.mxu0 %v1876
    %v2155 = vpop.f32.mrf.mxu0
    %v2156 = vadd.f32 %v2107, %v2155
    %v2157 = vpop.f32.mrf.mxu0
    %v2158 = vpop.f32.mrf.mxu0
    %v2159 = vadd.f32 %v2110, %v2158
    %v2160 = vpop.f32.mrf.mxu0
    %2161 = vmatprep.mubr.bf16.mxu0 0
    %2162 = vmatmul.mubr.bf16.gmra.mxu0 %v1879
    %v2163 = vpop.f32.mrf.mxu0
    %v2164 = vadd.f32 %v2115, %v2163
    %v2165 = vpop.f32.mrf.mxu0
    %v2166 = vpop.f32.mrf.mxu0
    %v2167 = vadd.f32 %v2118, %v2166
    %v2168 = vpop.f32.mrf.mxu0
    %2169 = vdwg.mxu0
    %v2170 = vadd.f32 %v1407, %v2156
    %v2171 = vadd.f32 %v1408, %v2159
    %v2172 = vadd.f32 %v1409, %v2164
    %v2173 = vadd.f32 %v1410, %v2167
    %v2174 = vld [vmem:[%s13] sm:$0x1]
    %v2176 = vlaneseq
    %v2177 = vshrl.u32 %v2176, 7
    %v2178 = vsub.s32 0, %v2177
    %v2179 = vrot.slane %v2174, %v2178
    %v2181 = vadd.f32 %v2170, %v2179
    %v2182 = vadd.f32 %v2171, %v2179
    %v2183 = vadd.f32 %v2172, %v2179
    %v2184 = vadd.f32 %v2173, %v2179
    %v2185 = vpack.c.bf16 %v2182, %v2181
    %v2186 = vpack.c.bf16 %v2184, %v2183
    %v2187 = vld [vmem:[%s14] sm:$0xf]
    %v2189 = vsel %vm528, %v2187, 0
    %2191 = vmatprep.subr.bf16.mxu0 0
    %2192 = vmatpush1.bf16.msra.mxu0 0
    %2193 = vmatprep.subr.bf16.mxu0 0
    %2194 = vmatpush1.bf16.msra.mxu0 0
    %2195 = vmatprep.subr.bf16.mxu0 0
    %2196 = vmatpush1.bf16.msra.mxu0 0
    %2197 = vmatprep.subr.bf16.mxu0 0
    %2198 = vmatpush1.bf16.msra.mxu0 0
    %2199 = vmatprep.subr.bf16.mxu0 0
    %2200 = vmatpush1.bf16.msra.mxu0 0
    %2201 = vmatprep.subr.bf16.mxu0 0
    %2202 = vmatpush1.bf16.msra.mxu0 0
    %2203 = vmatprep.subr.bf16.mxu0 0
    %2204 = vmatpush1.bf16.msra.mxu0 %v2186
    %2205 = vmatprep.subr.bf16.mxu0 0
    %2206 = vmatpush1.bf16.msra.mxu0 %v2185
    %2207 = vmatprep.subr.bf16.mxu0 0
    %2208 = vmatpush2.bf16.msra.mxu0 0
    %2209 = vmatprep.subr.bf16.mxu0 0
    %2210 = vmatpush2.bf16.msra.mxu0 0
    %2211 = vmatprep.subr.bf16.mxu0 0
    %2212 = vmatpush2.bf16.msra.mxu0 0
    %2213 = vmatprep.subr.bf16.mxu0 0
    %2214 = vmatpush2.bf16.msra.mxu0 0
    %2215 = vmatprep.subr.bf16.mxu0 0
    %2216 = vmatpush2.bf16.msra.mxu0 0
    %2217 = vmatprep.subr.bf16.mxu0 0
    %2218 = vmatpush2.bf16.msra.mxu0 0
    %2219 = vmatprep.subr.bf16.mxu0 0
    %2220 = vmatpush2.bf16.msra.mxu0 0
    %2221 = vmatprep.subr.bf16.mxu0 0
    %2222 = vmatpush2.bf16.msra.mxu0 0
    %2223 = vmatprep.mubr.bf16.mxu0 0
    %2224 = vmatmul.mubr.bf16.gmra.mxu0 %v2189
    %v2225 = vpop.f32.mrf.mxu0
    %v2226 = vadd.f32 0.0, %v2225
    %v2227 = vpop.f32.mrf.mxu0
    %v2228 = vpop.f32.mrf.mxu0
    %v2229 = vpop.f32.mrf.mxu0
    %2230 = vdwg.mxu0
    %v2231 = vpack.c.bf16 %v2226, %v2226
    %v2232 = vld [vmem:[%s15] sm:$0xf]
    %v2233 = vld [vmem:[%s15 + $0x4] sm:$0xf]
    %v2234 = vld [vmem:[%s15 + $0x8] sm:$0xf]
    %v2235 = vld [vmem:[%s15 + $0xc] sm:$0xf]
    %v2236 = vld [vmem:[%s15 + $0x10] sm:$0xf]
    %v2237 = vld [vmem:[%s15 + $0x14] sm:$0xf]
    %v2238 = vld [vmem:[%s15 + $0x18] sm:$0xf]
    %v2239 = vld [vmem:[%s15 + $0x1c] sm:$0xf]
    %v2240 = vld [vmem:[%s15 + $0x20] sm:$0xf]
    %v2241 = vld [vmem:[%s15 + $0x24] sm:$0xf]
    %v2242 = vld [vmem:[%s15 + $0x28] sm:$0xf]
    %v2243 = vld [vmem:[%s15 + $0x2c] sm:$0xf]
    %v2244 = vld [vmem:[%s15 + $0x30] sm:$0xf]
    %v2245 = vld [vmem:[%s15 + $0x34] sm:$0xf]
    %v2246 = vld [vmem:[%s15 + $0x38] sm:$0xf]
    %v2247 = vld [vmem:[%s15 + $0x3c] sm:$0xf]
    %s2248 = scalar_lea.vmem %s15, 64
    %v2249 = vld [vmem:[%s2248] sm:$0xf]
    %v2250 = vld [vmem:[%s2248 + $0x4] sm:$0xf]
    %v2251 = vld [vmem:[%s2248 + $0x8] sm:$0xf]
    %v2252 = vld [vmem:[%s2248 + $0xc] sm:$0xf]
    %v2253 = vld [vmem:[%s2248 + $0x10] sm:$0xf]
    %v2254 = vld [vmem:[%s2248 + $0x14] sm:$0xf]
    %v2255 = vld [vmem:[%s2248 + $0x18] sm:$0xf]
    %v2256 = vld [vmem:[%s2248 + $0x1c] sm:$0xf]
    %v2257 = vld [vmem:[%s2248 + $0x20] sm:$0xf]
    %v2258 = vld [vmem:[%s2248 + $0x24] sm:$0xf]
    %v2259 = vld [vmem:[%s2248 + $0x28] sm:$0xf]
    %v2260 = vld [vmem:[%s2248 + $0x2c] sm:$0xf]
    %v2261 = vld [vmem:[%s2248 + $0x30] sm:$0xf]
    %v2262 = vld [vmem:[%s2248 + $0x34] sm:$0xf]
    %v2263 = vld [vmem:[%s2248 + $0x38] sm:$0xf]
    %v2264 = vld [vmem:[%s2248 + $0x3c] sm:$0xf]
    %v2266 = vrot.slane %v2231, 1
    %v2284 = vunpack.c.l.b16 %v2249
    %v2285 = vunpack.c.l.b16 %v2250
    %v2286 = vunpack.c.l.b16 %v2251
    %v2287 = vunpack.c.l.b16 %v2252
    %v2288 = vunpack.c.l.b16 %v2253
    %v2289 = vunpack.c.l.b16 %v2254
    %v2290 = vunpack.c.l.b16 %v2255
    %v2291 = vunpack.c.l.b16 %v2256
    %v2292 = vunpack.c.l.b16 %v2257
    %v2293 = vunpack.c.l.b16 %v2258
    %v2294 = vunpack.c.l.b16 %v2259
    %v2295 = vunpack.c.l.b16 %v2260
    %v2296 = vunpack.c.l.b16 %v2261
    %v2297 = vunpack.c.l.b16 %v2262
    %v2298 = vunpack.c.l.b16 %v2263
    %v2299 = vunpack.c.l.b16 %v2264
    %v2300 = vpack.c.b16 %v2285, %v2284
    %v2301 = vpack.c.b16 %v2287, %v2286
    %v2302 = vpack.c.b16 %v2289, %v2288
    %v2303 = vpack.c.b16 %v2291, %v2290
    %v2304 = vpack.c.b16 %v2293, %v2292
    %v2305 = vpack.c.b16 %v2295, %v2294
    %v2306 = vpack.c.b16 %v2297, %v2296
    %v2307 = vpack.c.b16 %v2299, %v2298
    %2316 = vmatprep.subr.bf16.mxu0 0
    %2317 = vmatpush1.bf16.msra.mxu0 %v2307
    %2318 = vmatprep.subr.bf16.mxu0 0
    %2319 = vmatpush1.bf16.msra.mxu0 %v2306
    %2320 = vmatprep.subr.bf16.mxu0 0
    %2321 = vmatpush1.bf16.msra.mxu0 %v2305
    %2322 = vmatprep.subr.bf16.mxu0 0
    %2323 = vmatpush1.bf16.msra.mxu0 %v2304
    %2324 = vmatprep.subr.bf16.mxu0 0
    %2325 = vmatpush1.bf16.msra.mxu0 %v2303
    %2326 = vmatprep.subr.bf16.mxu0 0
    %2327 = vmatpush1.bf16.msra.mxu0 %v2302
    %2328 = vmatprep.subr.bf16.mxu0 0
    %2329 = vmatpush1.bf16.msra.mxu0 %v2301
    %2330 = vmatprep.subr.bf16.mxu0 0
    %2331 = vmatpush1.bf16.msra.mxu0 %v2300
    %2332 = vmatprep.subr.bf16.mxu0 0
    %2333 = vmatpush2.bf16.msra.mxu0 0
    %2334 = vmatprep.subr.bf16.mxu0 0
    %2335 = vmatpush2.bf16.msra.mxu0 0
    %2336 = vmatprep.subr.bf16.mxu0 0
    %2337 = vmatpush2.bf16.msra.mxu0 0
    %2338 = vmatprep.subr.bf16.mxu0 0
    %2339 = vmatpush2.bf16.msra.mxu0 0
    %2340 = vmatprep.subr.bf16.mxu0 0
    %2341 = vmatpush2.bf16.msra.mxu0 0
    %2342 = vmatprep.subr.bf16.mxu0 0
    %2343 = vmatpush2.bf16.msra.mxu0 0
    %2344 = vmatprep.subr.bf16.mxu0 0
    %2345 = vmatpush2.bf16.msra.mxu0 0
    %2346 = vmatprep.subr.bf16.mxu0 0
    %2347 = vmatpush2.bf16.msra.mxu0 0
    %2348 = vmatprep.mubr.bf16.mxu0 0
    %2349 = vmatmul.mubr.bf16.gmra.mxu0 %v2266
    %v2350 = vpop.f32.mrf.mxu0
    %v2351 = vadd.f32 0.0, %v2350
    %v2352 = vpop.f32.mrf.mxu0
    %v2353 = vpop.f32.mrf.mxu0
    %v2354 = vpop.f32.mrf.mxu0
    %2355 = vdwg.mxu0
    %v2372 = vunpack.c.l.b16 %v2232
    %v2373 = vunpack.c.l.b16 %v2233
    %v2374 = vunpack.c.l.b16 %v2234
    %v2375 = vunpack.c.l.b16 %v2235
    %v2376 = vunpack.c.l.b16 %v2236
    %v2377 = vunpack.c.l.b16 %v2237
    %v2378 = vunpack.c.l.b16 %v2238
    %v2379 = vunpack.c.l.b16 %v2239
    %v2380 = vunpack.c.l.b16 %v2240
    %v2381 = vunpack.c.l.b16 %v2241
    %v2382 = vunpack.c.l.b16 %v2242
    %v2383 = vunpack.c.l.b16 %v2243
    %v2384 = vunpack.c.l.b16 %v2244
    %v2385 = vunpack.c.l.b16 %v2245
    %v2386 = vunpack.c.l.b16 %v2246
    %v2387 = vunpack.c.l.b16 %v2247
    %v2388 = vpack.c.b16 %v2373, %v2372
    %v2389 = vpack.c.b16 %v2375, %v2374
    %v2390 = vpack.c.b16 %v2377, %v2376
    %v2391 = vpack.c.b16 %v2379, %v2378
    %v2392 = vpack.c.b16 %v2381, %v2380
    %v2393 = vpack.c.b16 %v2383, %v2382
    %v2394 = vpack.c.b16 %v2385, %v2384
    %v2395 = vpack.c.b16 %v2387, %v2386
    %2404 = vmatprep.subr.bf16.mxu0 0
    %2405 = vmatpush1.bf16.msra.mxu0 %v2395
    %2406 = vmatprep.subr.bf16.mxu0 0
    %2407 = vmatpush1.bf16.msra.mxu0 %v2394
    %2408 = vmatprep.subr.bf16.mxu0 0
    %2409 = vmatpush1.bf16.msra.mxu0 %v2393
    %2410 = vmatprep.subr.bf16.mxu0 0
    %2411 = vmatpush1.bf16.msra.mxu0 %v2392
    %2412 = vmatprep.subr.bf16.mxu0 0
    %2413 = vmatpush1.bf16.msra.mxu0 %v2391
    %2414 = vmatprep.subr.bf16.mxu0 0
    %2415 = vmatpush1.bf16.msra.mxu0 %v2390
    %2416 = vmatprep.subr.bf16.mxu0 0
    %2417 = vmatpush1.bf16.msra.mxu0 %v2389
    %2418 = vmatprep.subr.bf16.mxu0 0
    %2419 = vmatpush1.bf16.msra.mxu0 %v2388
    %2420 = vmatprep.subr.bf16.mxu0 0
    %2421 = vmatpush2.bf16.msra.mxu0 0
    %2422 = vmatprep.subr.bf16.mxu0 0
    %2423 = vmatpush2.bf16.msra.mxu0 0
    %2424 = vmatprep.subr.bf16.mxu0 0
    %2425 = vmatpush2.bf16.msra.mxu0 0
    %2426 = vmatprep.subr.bf16.mxu0 0
    %2427 = vmatpush2.bf16.msra.mxu0 0
    %2428 = vmatprep.subr.bf16.mxu0 0
    %2429 = vmatpush2.bf16.msra.mxu0 0
    %2430 = vmatprep.subr.bf16.mxu0 0
    %2431 = vmatpush2.bf16.msra.mxu0 0
    %2432 = vmatprep.subr.bf16.mxu0 0
    %2433 = vmatpush2.bf16.msra.mxu0 0
    %2434 = vmatprep.subr.bf16.mxu0 0
    %2435 = vmatpush2.bf16.msra.mxu0 0
    %2436 = vmatprep.mubr.bf16.mxu0 0
    %2437 = vmatmul.mubr.bf16.gmra.mxu0 %v2231
    %v2438 = vpop.f32.mrf.mxu0
    %v2439 = vadd.f32 %v2351, %v2438
    %v2440 = vpop.f32.mrf.mxu0
    %v2441 = vpop.f32.mrf.mxu0
    %v2442 = vpop.f32.mrf.mxu0
    %2443 = vdwg.mxu0
    %s2444 = scalar_lea.vmem %s15, 128
    %v2445 = vld [vmem:[%s2444] sm:$0xf]
    %v2446 = vld [vmem:[%s2444 + $0x4] sm:$0xf]
    %v2447 = vld [vmem:[%s2444 + $0x8] sm:$0xf]
    %v2448 = vld [vmem:[%s2444 + $0xc] sm:$0xf]
    %v2449 = vld [vmem:[%s2444 + $0x10] sm:$0xf]
    %v2450 = vld [vmem:[%s2444 + $0x14] sm:$0xf]
    %v2451 = vld [vmem:[%s2444 + $0x18] sm:$0xf]
    %v2452 = vld [vmem:[%s2444 + $0x1c] sm:$0xf]
    %v2453 = vld [vmem:[%s2444 + $0x20] sm:$0xf]
    %v2454 = vld [vmem:[%s2444 + $0x24] sm:$0xf]
    %v2455 = vld [vmem:[%s2444 + $0x28] sm:$0xf]
    %v2456 = vld [vmem:[%s2444 + $0x2c] sm:$0xf]
    %v2457 = vld [vmem:[%s2444 + $0x30] sm:$0xf]
    %v2458 = vld [vmem:[%s2444 + $0x34] sm:$0xf]
    %v2459 = vld [vmem:[%s2444 + $0x38] sm:$0xf]
    %v2460 = vld [vmem:[%s2444 + $0x3c] sm:$0xf]
    %v2461 = vrot.slane %v2231, 2
    %v2479 = vunpack.c.l.b16 %v2445
    %v2480 = vunpack.c.l.b16 %v2446
    %v2481 = vunpack.c.l.b16 %v2447
    %v2482 = vunpack.c.l.b16 %v2448
    %v2483 = vunpack.c.l.b16 %v2449
    %v2484 = vunpack.c.l.b16 %v2450
    %v2485 = vunpack.c.l.b16 %v2451
    %v2486 = vunpack.c.l.b16 %v2452
    %v2487 = vunpack.c.l.b16 %v2453
    %v2488 = vunpack.c.l.b16 %v2454
    %v2489 = vunpack.c.l.b16 %v2455
    %v2490 = vunpack.c.l.b16 %v2456
    %v2491 = vunpack.c.l.b16 %v2457
    %v2492 = vunpack.c.l.b16 %v2458
    %v2493 = vunpack.c.l.b16 %v2459
    %v2494 = vunpack.c.l.b16 %v2460
    %v2495 = vpack.c.b16 %v2480, %v2479
    %v2496 = vpack.c.b16 %v2482, %v2481
    %v2497 = vpack.c.b16 %v2484, %v2483
    %v2498 = vpack.c.b16 %v2486, %v2485
    %v2499 = vpack.c.b16 %v2488, %v2487
    %v2500 = vpack.c.b16 %v2490, %v2489
    %v2501 = vpack.c.b16 %v2492, %v2491
    %v2502 = vpack.c.b16 %v2494, %v2493
    %2511 = vmatprep.subr.bf16.mxu0 0
    %2512 = vmatpush1.bf16.msra.mxu0 %v2502
    %2513 = vmatprep.subr.bf16.mxu0 0
    %2514 = vmatpush1.bf16.msra.mxu0 %v2501
    %2515 = vmatprep.subr.bf16.mxu0 0
    %2516 = vmatpush1.bf16.msra.mxu0 %v2500
    %2517 = vmatprep.subr.bf16.mxu0 0
    %2518 = vmatpush1.bf16.msra.mxu0 %v2499
    %2519 = vmatprep.subr.bf16.mxu0 0
    %2520 = vmatpush1.bf16.msra.mxu0 %v2498
    %2521 = vmatprep.subr.bf16.mxu0 0
    %2522 = vmatpush1.bf16.msra.mxu0 %v2497
    %2523 = vmatprep.subr.bf16.mxu0 0
    %2524 = vmatpush1.bf16.msra.mxu0 %v2496
    %2525 = vmatprep.subr.bf16.mxu0 0
    %2526 = vmatpush1.bf16.msra.mxu0 %v2495
    %2527 = vmatprep.subr.bf16.mxu0 0
    %2528 = vmatpush2.bf16.msra.mxu0 0
    %2529 = vmatprep.subr.bf16.mxu0 0
    %2530 = vmatpush2.bf16.msra.mxu0 0
    %2531 = vmatprep.subr.bf16.mxu0 0
    %2532 = vmatpush2.bf16.msra.mxu0 0
    %2533 = vmatprep.subr.bf16.mxu0 0
    %2534 = vmatpush2.bf16.msra.mxu0 0
    %2535 = vmatprep.subr.bf16.mxu0 0
    %2536 = vmatpush2.bf16.msra.mxu0 0
    %2537 = vmatprep.subr.bf16.mxu0 0
    %2538 = vmatpush2.bf16.msra.mxu0 0
    %2539 = vmatprep.subr.bf16.mxu0 0
    %2540 = vmatpush2.bf16.msra.mxu0 0
    %2541 = vmatprep.subr.bf16.mxu0 0
    %2542 = vmatpush2.bf16.msra.mxu0 0
    %2543 = vmatprep.mubr.bf16.mxu0 0
    %2544 = vmatmul.mubr.bf16.gmra.mxu0 %v2461
    %v2545 = vpop.f32.mrf.mxu0
    %v2546 = vadd.f32 0.0, %v2545
    %v2547 = vpop.f32.mrf.mxu0
    %v2548 = vpop.f32.mrf.mxu0
    %v2549 = vpop.f32.mrf.mxu0
    %2550 = vdwg.mxu0
    %v2551 = vadd.f32 %v2439, %v2546
    %s2552 = scalar_lea.vmem %s15, 192
    %v2553 = vld [vmem:[%s2552] sm:$0xf]
    %v2554 = vld [vmem:[%s2552 + $0x4] sm:$0xf]
    %v2555 = vld [vmem:[%s2552 + $0x8] sm:$0xf]
    %v2556 = vld [vmem:[%s2552 + $0xc] sm:$0xf]
    %v2557 = vld [vmem:[%s2552 + $0x10] sm:$0xf]
    %v2558 = vld [vmem:[%s2552 + $0x14] sm:$0xf]
    %v2559 = vld [vmem:[%s2552 + $0x18] sm:$0xf]
    %v2560 = vld [vmem:[%s2552 + $0x1c] sm:$0xf]
    %v2561 = vld [vmem:[%s2552 + $0x20] sm:$0xf]
    %v2562 = vld [vmem:[%s2552 + $0x24] sm:$0xf]
    %v2563 = vld [vmem:[%s2552 + $0x28] sm:$0xf]
    %v2564 = vld [vmem:[%s2552 + $0x2c] sm:$0xf]
    %v2565 = vld [vmem:[%s2552 + $0x30] sm:$0xf]
    %v2566 = vld [vmem:[%s2552 + $0x34] sm:$0xf]
    %v2567 = vld [vmem:[%s2552 + $0x38] sm:$0xf]
    %v2568 = vld [vmem:[%s2552 + $0x3c] sm:$0xf]
    %v2569 = vrot.slane %v2231, 3
    %v2587 = vunpack.c.l.b16 %v2553
    %v2588 = vunpack.c.l.b16 %v2554
    %v2589 = vunpack.c.l.b16 %v2555
    %v2590 = vunpack.c.l.b16 %v2556
    %v2591 = vunpack.c.l.b16 %v2557
    %v2592 = vunpack.c.l.b16 %v2558
    %v2593 = vunpack.c.l.b16 %v2559
    %v2594 = vunpack.c.l.b16 %v2560
    %v2595 = vunpack.c.l.b16 %v2561
    %v2596 = vunpack.c.l.b16 %v2562
    %v2597 = vunpack.c.l.b16 %v2563
    %v2598 = vunpack.c.l.b16 %v2564
    %v2599 = vunpack.c.l.b16 %v2565
    %v2600 = vunpack.c.l.b16 %v2566
    %v2601 = vunpack.c.l.b16 %v2567
    %v2602 = vunpack.c.l.b16 %v2568
    %v2603 = vpack.c.b16 %v2588, %v2587
    %v2604 = vpack.c.b16 %v2590, %v2589
    %v2605 = vpack.c.b16 %v2592, %v2591
    %v2606 = vpack.c.b16 %v2594, %v2593
    %v2607 = vpack.c.b16 %v2596, %v2595
    %v2608 = vpack.c.b16 %v2598, %v2597
    %v2609 = vpack.c.b16 %v2600, %v2599
    %v2610 = vpack.c.b16 %v2602, %v2601
    %2619 = vmatprep.subr.bf16.mxu0 0
    %2620 = vmatpush1.bf16.msra.mxu0 %v2610
    %2621 = vmatprep.subr.bf16.mxu0 0
    %2622 = vmatpush1.bf16.msra.mxu0 %v2609
    %2623 = vmatprep.subr.bf16.mxu0 0
    %2624 = vmatpush1.bf16.msra.mxu0 %v2608
    %2625 = vmatprep.subr.bf16.mxu0 0
    %2626 = vmatpush1.bf16.msra.mxu0 %v2607
    %2627 = vmatprep.subr.bf16.mxu0 0
    %2628 = vmatpush1.bf16.msra.mxu0 %v2606
    %2629 = vmatprep.subr.bf16.mxu0 0
    %2630 = vmatpush1.bf16.msra.mxu0 %v2605
    %2631 = vmatprep.subr.bf16.mxu0 0
    %2632 = vmatpush1.bf16.msra.mxu0 %v2604
    %2633 = vmatprep.subr.bf16.mxu0 0
    %2634 = vmatpush1.bf16.msra.mxu0 %v2603
    %2635 = vmatprep.subr.bf16.mxu0 0
    %2636 = vmatpush2.bf16.msra.mxu0 0
    %2637 = vmatprep.subr.bf16.mxu0 0
    %2638 = vmatpush2.bf16.msra.mxu0 0
    %2639 = vmatprep.subr.bf16.mxu0 0
    %2640 = vmatpush2.bf16.msra.mxu0 0
    %2641 = vmatprep.subr.bf16.mxu0 0
    %2642 = vmatpush2.bf16.msra.mxu0 0
    %2643 = vmatprep.subr.bf16.mxu0 0
    %2644 = vmatpush2.bf16.msra.mxu0 0
    %2645 = vmatprep.subr.bf16.mxu0 0
    %2646 = vmatpush2.bf16.msra.mxu0 0
    %2647 = vmatprep.subr.bf16.mxu0 0
    %2648 = vmatpush2.bf16.msra.mxu0 0
    %2649 = vmatprep.subr.bf16.mxu0 0
    %2650 = vmatpush2.bf16.msra.mxu0 0
    %2651 = vmatprep.mubr.bf16.mxu0 0
    %2652 = vmatmul.mubr.bf16.gmra.mxu0 %v2569
    %v2653 = vpop.f32.mrf.mxu0
    %v2654 = vadd.f32 0.0, %v2653
    %v2655 = vpop.f32.mrf.mxu0
    %v2656 = vpop.f32.mrf.mxu0
    %v2657 = vpop.f32.mrf.mxu0
    %2658 = vdwg.mxu0
    %v2659 = vadd.f32 %v2551, %v2654
    %v2660 = vld [vmem:[%s16] sm:$0x1]
    %v2662 = vlaneseq
    %v2663 = vshrl.u32 %v2662, 7
    %v2664 = vsub.s32 0, %v2663
    %v2665 = vrot.slane %v2660, %v2664
    %v2667 = vadd.f32 %v2659, %v2665
    %2668 = vst [vmem:[#allocation2] sm:$0x3] %v2667
    // Predicated region
    $region70: #{swin_tiny_forward.1} parent=1 // pred_check
      _
    $region71: #{swin_tiny_forward.1} parent=1 // pred_check_branch
      %2670 = sbr.rel (0) target = $region73
    $region72: #{swin_tiny_forward.1} parent=1 // pred_region
      %s2672 = ssub.s32 32, 32
      %2673 = vsyncadd [#allocation3], %s2672
      %s2675 = sshll.u32 [#allocation2], 4
      %s2676 = int_to_ptr.vmem [resolvable:$true] %s2675
      %2678 = dma.vmem_to_hbm [thread:$0]  %s2676, 32, %s17, [#allocation3]
    $region73: #{swin_tiny_forward.1} parent=1 // pred_fallthru
      _
    // Predicated region
    $region74: #{swin_tiny_forward.1} parent=1 // pred_check
      _
    $region75: #{swin_tiny_forward.1} parent=1 // pred_check_branch
      %2680 = sbr.rel (0) target = $region77
    $region76: #{swin_tiny_forward.1} parent=1 // pred_region
      %2681 = dma.done [#allocation3], 32
    $region77: #{swin_tiny_forward.1} parent=1 // pred_fallthru
      _
    %2682 = vsyncpa [#allocation3], 1

</llo_original>
